<compile_context>
chip_gen: v7x
topology: tpu7x:2x2x1
jax: 0.10.0
libtpu: 0.0.40
codegen_flags: <defaults>
</compile_context>

<pallas_src>
import functools

import jax
import jax.numpy as jnp
from jax.experimental import pallas as pl
from jax.experimental.pallas import tpu as pltpu


def mhca_kernel(xq_ref, k_ref, v_ref, wq_ref, bq_ref, wo_ref, bo_ref,
                out_ref, q_scr, m_scr, l_scr, acc_scr, *,
                num_heads, heads_dim, compute_dtype, approx_recip):
    """One (batch, q_block, kv_block) grid step of flash-style cross attention."""
    H, hd = num_heads, heads_dim
    ki = pl.program_id(2)

    # --- once per (batch, q_block): Q projection + online-softmax state init.
    @pl.when(ki == 0)
    def _():
        xq = xq_ref[0].astype(compute_dtype)                       # (TQ, D)
        # 1/sqrt(hd) is already folded into wq/bq.
        q = jnp.dot(xq, wq_ref[...],
                    preferred_element_type=jnp.float32) + bq_ref[...]
        TQ = q.shape[0]
        # (TQ, D) -> (H, TQ, hd); matches reshape(B,S,H,hd).permute(0,2,1,3).
        q_scr[...] = jnp.transpose(q.reshape(TQ, H, hd),
                                   (1, 0, 2)).astype(compute_dtype)
        m_scr[...] = jnp.full_like(m_scr, -jnp.inf)
        l_scr[...] = jnp.zeros_like(l_scr)
        acc_scr[...] = jnp.zeros_like(acc_scr)

    # --- per KV tile: scores, online softmax update, weighted values.
    k = k_ref[0].astype(compute_dtype)                             # (H, TKV, hd)
    v = v_ref[0].astype(compute_dtype)                             # (H, TKV, hd)

    s = jnp.einsum("hqd,hkd->hqk", q_scr[...], k,
                   preferred_element_type=jnp.float32)             # (H, TQ, TKV)

    m_prev = m_scr[...]
    m_new = jnp.maximum(m_prev, jnp.max(s, axis=-1, keepdims=True))
    alpha = jnp.exp(m_prev - m_new)                                # (H, TQ, 1)
    # Single live probability tensor: exp -> cast; the row sum accumulates in f32.
    p = jnp.exp(s - m_new).astype(compute_dtype)
    l_scr[...] = alpha * l_scr[...] + jnp.sum(p, axis=-1, keepdims=True,
                                              dtype=jnp.float32)
    acc_scr[...] = alpha * acc_scr[...] + jnp.einsum(
        "hqk,hkd->hqd", p, v, preferred_element_type=jnp.float32)
    m_scr[...] = m_new

    # --- last KV tile: normalize, head merge, output projection.
    @pl.when(ki == pl.num_programs(2) - 1)
    def _():
        ctx = acc_scr[...] * pl.reciprocal(l_scr[...], approx=approx_recip)
        TQ = ctx.shape[1]
        # (H, TQ, hd) -> (TQ, H*hd): matches permute(0,2,1,3).reshape(B,S,D).
        ctx2 = jnp.transpose(ctx, (1, 0, 2)).reshape(TQ, H * hd).astype(compute_dtype)
        out = jnp.dot(ctx2, wo_ref[...],
                      preferred_element_type=jnp.float32) + bo_ref[...]
        out_ref[0] = out.astype(out_ref.dtype)


def _usable_vmem_bytes():
    """Per-generation usable VMEM (physical capacity minus pipeline headroom)."""
    try:
        cap = pltpu.get_tpu_info().vmem_capacity_bytes
    except Exception:
        cap = 64 * 2**20   # conservative (v7x-sized) fallback
    return max(int(cap) * 7 // 8, 32 * 2**20)


def _pick_block(total, target):
    """Largest divisor of `total` <= target, preferring multiples of 256
    (MXU M-dim on v6e/v7x), then 128 (lanes), then 8 (sublanes)."""
    if total <= target:
        return total
    for step in (256, 128, 8):
        cand = (target // step) * step
        while cand >= step:
            if total % cand == 0:
                return cand
            cand -= step
    # No aligned divisor <= target: fall back to the whole axis.
    # TODO(synk): pad ragged sequence lengths instead of taking the full axis.
    return total


def _choose_tiles(S, D, H, hd, csz, usable):
    """Derive (TQ, TKV) and a per-step VMEM estimate from the usable budget."""
    weights = 2 * D * D * csz + 2 * D * 4          # wq + wo (single-buffered) + biases
    est, TQ, TKV = weights, S, S
    for tq_t, tkv_t in ((1024, 1024), (512, 1024), (512, 512), (256, 512),
                        (256, 256), (128, 256), (128, 128), (64, 128),
                        (32, 128), (16, 128), (8, 128)):
        TQ = _pick_block(S, tq_t)
        TKV = _pick_block(S, tkv_t)
        est = (weights
               + 2 * TQ * D * 4                    # x_q block (double-buffered, f32 in)
               + 2 * 2 * H * TKV * hd * csz        # k + v blocks (double-buffered)
               + 2 * TQ * D * 4                    # out block (double-buffered)
               + H * TQ * hd * (csz + 4)           # q scratch + f32 accumulator
               + 2 * H * TQ * 4                    # m, l scratch
               + 3 * H * TQ * TKV * 4              # scores / exp / temporaries
               + 2 * TQ * D * 4)                   # q-projection / ctx2 temporaries
        if 3 * est <= 2 * usable:                  # ~1.5x headroom
            break
    return TQ, TKV, est


def multi_head_cross_attention(embeddings, params, *, num_heads,
                               compute_dtype=jnp.bfloat16):
    """embeddings: (B, S, D). params: pre-transposed (in, out) weights + (1, out) biases."""
    B, S, D = embeddings.shape
    assert D % num_heads == 0
    hd = D // num_heads
    scale = 1.0 / (hd ** 0.5)
    csz = jnp.dtype(compute_dtype).itemsize
    approx_recip = jnp.dtype(compute_dtype) != jnp.dtype(jnp.float32)

    # ---- K/V projection hoisted out of the kernel (computed ONCE, plain XLA).
    # Matches PyTorch: kv_layer -> reshape(B,S,H,2hd) -> permute(0,2,1,3) -> chunk.
    kv = embeddings.astype(jnp.float32) @ params["wkv"] + params["bkv"][0]
    kv = kv.reshape(B, S, num_heads, 2 * hd).transpose(0, 2, 1, 3)   # (B,H,S,2hd)
    k = kv[..., :hd].astype(compute_dtype)                           # (B,H,S,hd)
    v = kv[..., hd:].astype(compute_dtype)                           # (B,H,S,hd)

    # Fold the attention scale into the Q projection; MXU weights in compute dtype.
    wq = (params["wq"] * scale).astype(compute_dtype)
    bq = (params["bq"] * scale).astype(jnp.float32)
    wo = params["wo"].astype(compute_dtype)
    bo = params["bo"].astype(jnp.float32)

    # ---- per-generation tiling / VMEM budget.
    usable = _usable_vmem_bytes()
    TQ, TKV, est = _choose_tiles(S, D, num_heads, hd, csz, usable)
    nq, nkv = S // TQ, S // TKV
    vmem_limit = int(min(max(est * 3 // 2, 32 * 2**20), usable))

    kernel = functools.partial(mhca_kernel, num_heads=num_heads, heads_dim=hd,
                               compute_dtype=compute_dtype,
                               approx_recip=approx_recip)

    single = pl.Buffered(1)   # grid-invariant inputs: no duplicate VMEM copy

    return pl.pallas_call(
        kernel,
        out_shape=jax.ShapeDtypeStruct((B, S, D), embeddings.dtype),
        grid_spec=pltpu.PrefetchScalarGridSpec(
            num_scalar_prefetch=0,
            grid=(B, nq, nkv),
            in_specs=[
                pl.BlockSpec((1, TQ, D), lambda b, qi, ki: (b, qi, 0)),        # x (Q rows)
                pl.BlockSpec((1, num_heads, TKV, hd),
                             lambda b, qi, ki: (b, 0, ki, 0)),                 # K tile
                pl.BlockSpec((1, num_heads, TKV, hd),
                             lambda b, qi, ki: (b, 0, ki, 0)),                 # V tile
                pl.BlockSpec((D, D), lambda b, qi, ki: (0, 0),
                             pipeline_mode=single),                            # wq (scaled)
                pl.BlockSpec((1, D), lambda b, qi, ki: (0, 0),
                             pipeline_mode=single),                            # bq (scaled)
                pl.BlockSpec((D, D), lambda b, qi, ki: (0, 0),
                             pipeline_mode=single),                            # wo
                pl.BlockSpec((1, D), lambda b, qi, ki: (0, 0),
                             pipeline_mode=single),                            # bo
            ],
            out_specs=pl.BlockSpec((1, TQ, D), lambda b, qi, ki: (b, qi, 0)),
            scratch_shapes=[
                pltpu.VMEM((num_heads, TQ, hd), compute_dtype),   # q (head-major)
                pltpu.VMEM((num_heads, TQ, 1), jnp.float32),      # running max m
                pltpu.VMEM((num_heads, TQ, 1), jnp.float32),      # running sum l
                pltpu.VMEM((num_heads, TQ, hd), jnp.float32),     # context accumulator
            ],
        ),
        compiler_params=pltpu.CompilerParams(
            dimension_semantics=("parallel", "parallel", "arbitrary"),
            vmem_limit_bytes=vmem_limit),
    )(embeddings, k, v, wq, bq, wo, bo)


def reference_mhca(embeddings, params, *, num_heads):
    """Plain-JAX reference mirroring the PyTorch forward (mask=None)."""
    B, S, D = embeddings.shape
    hd = D // num_heads
    q = embeddings @ params["wq"] + params["bq"][0]
    kv = embeddings @ params["wkv"] + params["bkv"][0]
    kv = kv.reshape(B, S, num_heads, 2 * hd).transpose(0, 2, 1, 3)
    q = q.reshape(B, S, num_heads, hd).transpose(0, 2, 1, 3)
    k, v = kv[..., :hd], kv[..., hd:]
    scaled = jnp.einsum("bhqd,bhkd->bhqk", q, k) / (hd ** 0.5)
    attn = jax.nn.softmax(scaled, axis=-1)
    ctx = jnp.einsum("bhqk,bhkd->bhqd", attn, v)
    ctx = ctx.transpose(0, 2, 1, 3).reshape(B, S, D)
    return ctx @ params["wo"] + params["bo"][0]


if __name__ == "__main__":
    B, S, D, H = 2, 8, 32, 4

    key = jax.random.PRNGKey(0)
    keys = jax.random.split(key, 7)

    # Deterministic init mimicking nn.Linear default (uniform +-1/sqrt(fan_in)),
    # stored pre-transposed as (in_features, out_features).
    bound = 1.0 / (D ** 0.5)
    params = {
        "wq": jax.random.uniform(keys[0], (D, D), jnp.float32, -bound, bound),
        "bq": jax.random.uniform(keys[1], (1, D), jnp.float32, -bound, bound),
        "wkv": jax.random.uniform(keys[2], (D, 2 * D), jnp.float32, -bound, bound),
        "bkv": jax.random.uniform(keys[3], (1, 2 * D), jnp.float32, -bound, bound),
        "wo": jax.random.uniform(keys[4], (D, D), jnp.float32, -bound, bound),
        "bo": jax.random.uniform(keys[5], (1, D), jnp.float32, -bound, bound),
    }
    embeddings = jax.random.normal(keys[6], (B, S, D), jnp.float32)

    with jax.default_matmul_precision("highest"):
        ref = reference_mhca(embeddings, params, num_heads=H)

    # f32 compute path (exact reciprocal): tight parity check.
    mhca_f32 = jax.jit(functools.partial(multi_head_cross_attention,
                                         num_heads=H, compute_dtype=jnp.float32))
    out_f32 = jax.block_until_ready(mhca_f32(embeddings, params))
    assert out_f32.shape == (B, S, D)
    assert jnp.allclose(out_f32, ref, atol=2e-3, rtol=2e-3), "f32 path mismatch"

    # Default bf16 MXU path (f32 accumulation): looser tolerance for bf16 inputs.
    mhca_bf16 = jax.jit(functools.partial(multi_head_cross_attention,
                                          num_heads=H, compute_dtype=jnp.bfloat16))
    out_bf16 = jax.block_until_ready(mhca_bf16(embeddings, params))
    assert out_bf16.shape == (B, S, D)
    assert jnp.allclose(out_bf16, ref, atol=7e-2, rtol=7e-2), "bf16 path mismatch"

    print("KERNEL_OK")
</pallas_src>

<mosaic_0001>
module attributes {stable_mosaic.version = 11 : i64} {
  func.func @mhca_kernel(%arg0: i32, %arg1: i32, %arg2: i32, %arg3: memref<1x8x32xf32, #tpu.memory_space<vmem>>, %arg4: memref<1x4x8x8xf32, #tpu.memory_space<vmem>>, %arg5: memref<1x4x8x8xf32, #tpu.memory_space<vmem>>, %arg6: memref<32x32xf32, #tpu.memory_space<vmem>>, %arg7: memref<1x32xf32, #tpu.memory_space<vmem>>, %arg8: memref<32x32xf32, #tpu.memory_space<vmem>>, %arg9: memref<1x32xf32, #tpu.memory_space<vmem>>, %arg10: memref<1x8x32xf32, #tpu.memory_space<vmem>>, %arg11: memref<4x8x8xf32, #tpu.memory_space<vmem>>, %arg12: memref<4x8x1xf32, #tpu.memory_space<vmem>>, %arg13: memref<4x8x1xf32, #tpu.memory_space<vmem>>, %arg14: memref<4x8x8xf32, #tpu.memory_space<vmem>>) attributes {dimension_semantics = [#tpu.dimension_semantics<parallel>, #tpu.dimension_semantics<parallel>, #tpu.dimension_semantics<arbitrary>], iteration_bounds = array<i64: 2, 1, 1>, scalar_prefetch = 0 : i64, scratch_operands = 4 : i64, tpu.core_type = #tpu.core_type<tc>, window_params = [{transform_indices = @transform_0, window_bounds = array<i64: 1, 8, 32>}, {transform_indices = @transform_1, window_bounds = array<i64: 1, 4, 8, 8>}, {transform_indices = @transform_2, window_bounds = array<i64: 1, 4, 8, 8>}, {pipeline_mode = #tpu.pipeline_mode<synchronous>, transform_indices = @transform_3, window_bounds = array<i64: 32, 32>}, {pipeline_mode = #tpu.pipeline_mode<synchronous>, transform_indices = @transform_4, window_bounds = array<i64: 1, 32>}, {pipeline_mode = #tpu.pipeline_mode<synchronous>, transform_indices = @transform_5, window_bounds = array<i64: 32, 32>}, {pipeline_mode = #tpu.pipeline_mode<synchronous>, transform_indices = @transform_6, window_bounds = array<i64: 1, 32>}, {transform_indices = @transform_7, window_bounds = array<i64: 1, 8, 32>}]} {
    %c0_i32 = arith.constant 0 : i32
    %0 = arith.cmpi eq, %arg2, %c0_i32 : i32
    %1 = arith.extui %0 : i1 to i32
    %c0_i32_0 = arith.constant 0 : i32
    %2 = arith.cmpi ne, %1, %c0_i32_0 : i32
    scf.if %2 {
      %c0_34 = arith.constant 0 : index
      %c0_35 = arith.constant 0 : index
      %c0_36 = arith.constant 0 : index
      %34 = vector.load %arg3[%c0_34, %c0_35, %c0_36] : memref<1x8x32xf32, #tpu.memory_space<vmem>>, vector<1x8x32xf32>
      %35 = vector.shape_cast %34 : vector<1x8x32xf32> to vector<8x32xf32>
      %c0_37 = arith.constant 0 : index
      %c0_38 = arith.constant 0 : index
      %36 = vector.load %arg6[%c0_37, %c0_38] : memref<32x32xf32, #tpu.memory_space<vmem>>, vector<32x32xf32>
      %cst_39 = arith.constant dense<0.000000e+00> : vector<8x32xf32>
      %37 = tpu.matmul %35, %36, %cst_39 {dimension_numbers = #tpu.dot_dimension_numbers<[1], [0], [0], [1], [0, 0, 1, 1], [], []>} : vector<8x32xf32>, vector<32x32xf32>, vector<8x32xf32> -> vector<8x32xf32>
      %c0_40 = arith.constant 0 : index
      %c0_41 = arith.constant 0 : index
      %38 = vector.load %arg7[%c0_40, %c0_41] : memref<1x32xf32, #tpu.memory_space<vmem>>, vector<1x32xf32>
      %39 = vector.broadcast %38 : vector<1x32xf32> to vector<8x32xf32>
      %40 = arith.addf %37, %39 : vector<8x32xf32>
      %41 = vector.shape_cast %40 : vector<8x32xf32> to vector<8x4x8xf32>
      %42 = tpu.transpose %41, [1, 0, 2] : vector<8x4x8xf32> -> vector<4x8x8xf32>
      %c0_42 = arith.constant 0 : index
      %c0_43 = arith.constant 0 : index
      %c0_44 = arith.constant 0 : index
      %43 = vector.load %arg11[%c0_42, %c0_43, %c0_44] : memref<4x8x8xf32, #tpu.memory_space<vmem>>, vector<4x8x8xf32>
      tpu.vector_store %arg11[%c0_42, %c0_43, %c0_44], %42 {strides = array<i32>} : memref<4x8x8xf32, #tpu.memory_space<vmem>>, vector<4x8x8xf32>,
      %cst_45 = arith.constant 0xFF800000 : f32
      %44 = vector.broadcast %cst_45 : f32 to vector<4x8x1xf32>
      %c0_46 = arith.constant 0 : index
      %c0_47 = arith.constant 0 : index
      %c0_48 = arith.constant 0 : index
      %45 = vector.load %arg12[%c0_46, %c0_47, %c0_48] : memref<4x8x1xf32, #tpu.memory_space<vmem>>, vector<4x8x1xf32>
      tpu.vector_store %arg12[%c0_46, %c0_47, %c0_48], %44 {strides = array<i32>} : memref<4x8x1xf32, #tpu.memory_space<vmem>>, vector<4x8x1xf32>,
      %cst_49 = arith.constant 0.000000e+00 : f32
      %46 = vector.broadcast %cst_49 : f32 to vector<4x8x1xf32>
      %c0_50 = arith.constant 0 : index
      %c0_51 = arith.constant 0 : index
      %c0_52 = arith.constant 0 : index
      %47 = vector.load %arg13[%c0_50, %c0_51, %c0_52] : memref<4x8x1xf32, #tpu.memory_space<vmem>>, vector<4x8x1xf32>
      tpu.vector_store %arg13[%c0_50, %c0_51, %c0_52], %46 {strides = array<i32>} : memref<4x8x1xf32, #tpu.memory_space<vmem>>, vector<4x8x1xf32>,
      %cst_53 = arith.constant 0.000000e+00 : f32
      %48 = vector.broadcast %cst_53 : f32 to vector<4x8x8xf32>
      %c0_54 = arith.constant 0 : index
      %c0_55 = arith.constant 0 : index
      %c0_56 = arith.constant 0 : index
      %49 = vector.load %arg14[%c0_54, %c0_55, %c0_56] : memref<4x8x8xf32, #tpu.memory_space<vmem>>, vector<4x8x8xf32>
      tpu.vector_store %arg14[%c0_54, %c0_55, %c0_56], %48 {strides = array<i32>} : memref<4x8x8xf32, #tpu.memory_space<vmem>>, vector<4x8x8xf32>,
    } else {
    }
    %c0 = arith.constant 0 : index
    %c0_1 = arith.constant 0 : index
    %c0_2 = arith.constant 0 : index
    %c0_3 = arith.constant 0 : index
    %3 = vector.load %arg4[%c0, %c0_1, %c0_2, %c0_3] : memref<1x4x8x8xf32, #tpu.memory_space<vmem>>, vector<1x4x8x8xf32>
    %4 = vector.shape_cast %3 : vector<1x4x8x8xf32> to vector<4x8x8xf32>
    %c0_4 = arith.constant 0 : index
    %c0_5 = arith.constant 0 : index
    %c0_6 = arith.constant 0 : index
    %c0_7 = arith.constant 0 : index
    %5 = vector.load %arg5[%c0_4, %c0_5, %c0_6, %c0_7] : memref<1x4x8x8xf32, #tpu.memory_space<vmem>>, vector<1x4x8x8xf32>
    %6 = vector.shape_cast %5 : vector<1x4x8x8xf32> to vector<4x8x8xf32>
    %c0_8 = arith.constant 0 : index
    %c0_9 = arith.constant 0 : index
    %c0_10 = arith.constant 0 : index
    %7 = vector.load %arg11[%c0_8, %c0_9, %c0_10] : memref<4x8x8xf32, #tpu.memory_space<vmem>>, vector<4x8x8xf32>
    "tpu.trace_start"() <{level = 10 : i32, message = "hqd,hkd->hqk"}> : () -> ()
    %cst = arith.constant dense<0.000000e+00> : vector<4x8x8xf32>
    %8 = tpu.matmul %7, %4, %cst {dimension_numbers = #tpu.dot_dimension_numbers<[2], [2], [1], [1], [0, 0, 0, 1, 1, 1], [0], [0]>} : vector<4x8x8xf32>, vector<4x8x8xf32>, vector<4x8x8xf32> -> vector<4x8x8xf32>
    "tpu.trace_stop"() : () -> ()
    %c0_11 = arith.constant 0 : index
    %c0_12 = arith.constant 0 : index
    %c0_13 = arith.constant 0 : index
    %9 = vector.load %arg12[%c0_11, %c0_12, %c0_13] : memref<4x8x1xf32, #tpu.memory_space<vmem>>, vector<4x8x1xf32>
    %cst_14 = arith.constant dense<0xFF800000> : vector<4x8xf32>
    %10 = vector.multi_reduction <maximumf>, %8, %cst_14 [2] : vector<4x8x8xf32> to vector<4x8xf32>
    %11 = vector.shape_cast %10 : vector<4x8xf32> to vector<4x8x1xf32>
    %12 = arith.maximumf %9, %11 : vector<4x8x1xf32>
    %13 = arith.subf %9, %12 : vector<4x8x1xf32>
    %14 = math.exp %13 : vector<4x8x1xf32>
    %15 = vector.broadcast %12 : vector<4x8x1xf32> to vector<4x8x8xf32>
    %16 = arith.subf %8, %15 : vector<4x8x8xf32>
    %17 = math.exp %16 : vector<4x8x8xf32>
    %c0_15 = arith.constant 0 : index
    %c0_16 = arith.constant 0 : index
    %c0_17 = arith.constant 0 : index
    %18 = vector.load %arg13[%c0_15, %c0_16, %c0_17] : memref<4x8x1xf32, #tpu.memory_space<vmem>>, vector<4x8x1xf32>
    %19 = arith.mulf %14, %18 : vector<4x8x1xf32>
    %cst_18 = arith.constant dense<0.000000e+00> : vector<4x8xf32>
    %20 = vector.multi_reduction <add>, %17, %cst_18 [2] : vector<4x8x8xf32> to vector<4x8xf32>
    %21 = vector.shape_cast %20 : vector<4x8xf32> to vector<4x8x1xf32>
    %22 = arith.addf %19, %21 : vector<4x8x1xf32>
    %c0_19 = arith.constant 0 : index
    %c0_20 = arith.constant 0 : index
    %c0_21 = arith.constant 0 : index
    %23 = vector.load %arg13[%c0_19, %c0_20, %c0_21] : memref<4x8x1xf32, #tpu.memory_space<vmem>>, vector<4x8x1xf32>
    tpu.vector_store %arg13[%c0_19, %c0_20, %c0_21], %22 {strides = array<i32>} : memref<4x8x1xf32, #tpu.memory_space<vmem>>, vector<4x8x1xf32>,
    %c0_22 = arith.constant 0 : index
    %c0_23 = arith.constant 0 : index
    %c0_24 = arith.constant 0 : index
    %24 = vector.load %arg14[%c0_22, %c0_23, %c0_24] : memref<4x8x8xf32, #tpu.memory_space<vmem>>, vector<4x8x8xf32>
    %25 = vector.broadcast %14 : vector<4x8x1xf32> to vector<4x8x8xf32>
    %26 = arith.mulf %25, %24 : vector<4x8x8xf32>
    "tpu.trace_start"() <{level = 10 : i32, message = "hqk,hkd->hqd"}> : () -> ()
    %cst_25 = arith.constant dense<0.000000e+00> : vector<4x8x8xf32>
    %27 = tpu.matmul %17, %6, %cst_25 {dimension_numbers = #tpu.dot_dimension_numbers<[2], [1], [1], [2], [0, 0, 0, 1, 1, 2], [0], [0]>} : vector<4x8x8xf32>, vector<4x8x8xf32>, vector<4x8x8xf32> -> vector<4x8x8xf32>
    "tpu.trace_stop"() : () -> ()
    %28 = arith.addf %26, %27 : vector<4x8x8xf32>
    %c0_26 = arith.constant 0 : index
    %c0_27 = arith.constant 0 : index
    %c0_28 = arith.constant 0 : index
    %29 = vector.load %arg14[%c0_26, %c0_27, %c0_28] : memref<4x8x8xf32, #tpu.memory_space<vmem>>, vector<4x8x8xf32>
    tpu.vector_store %arg14[%c0_26, %c0_27, %c0_28], %28 {strides = array<i32>} : memref<4x8x8xf32, #tpu.memory_space<vmem>>, vector<4x8x8xf32>,
    %c0_29 = arith.constant 0 : index
    %c0_30 = arith.constant 0 : index
    %c0_31 = arith.constant 0 : index
    %30 = vector.load %arg12[%c0_29, %c0_30, %c0_31] : memref<4x8x1xf32, #tpu.memory_space<vmem>>, vector<4x8x1xf32>
    tpu.vector_store %arg12[%c0_29, %c0_30, %c0_31], %12 {strides = array<i32>} : memref<4x8x1xf32, #tpu.memory_space<vmem>>, vector<4x8x1xf32>,
    %c0_i32_32 = arith.constant 0 : i32
    %31 = arith.cmpi eq, %arg2, %c0_i32_32 : i32
    %32 = arith.extui %31 : i1 to i32
    %c0_i32_33 = arith.constant 0 : i32
    %33 = arith.cmpi ne, %32, %c0_i32_33 : i32
    scf.if %33 {
      %c0_34 = arith.constant 0 : index
      %c0_35 = arith.constant 0 : index
      %c0_36 = arith.constant 0 : index
      %34 = vector.load %arg14[%c0_34, %c0_35, %c0_36] : memref<4x8x8xf32, #tpu.memory_space<vmem>>, vector<4x8x8xf32>
      %c0_37 = arith.constant 0 : index
      %c0_38 = arith.constant 0 : index
      %c0_39 = arith.constant 0 : index
      %35 = vector.load %arg13[%c0_37, %c0_38, %c0_39] : memref<4x8x1xf32, #tpu.memory_space<vmem>>, vector<4x8x1xf32>
      %36 = tpu.reciprocal %35 : vector<4x8x1xf32> -> vector<4x8x1xf32>
      %37 = vector.broadcast %36 : vector<4x8x1xf32> to vector<4x8x8xf32>
      %38 = arith.mulf %34, %37 : vector<4x8x8xf32>
      %39 = tpu.transpose %38, [1, 0, 2] : vector<4x8x8xf32> -> vector<8x4x8xf32>
      %40 = vector.shape_cast %39 : vector<8x4x8xf32> to vector<8x32xf32>
      %c0_40 = arith.constant 0 : index
      %c0_41 = arith.constant 0 : index
      %41 = vector.load %arg8[%c0_40, %c0_41] : memref<32x32xf32, #tpu.memory_space<vmem>>, vector<32x32xf32>
      %cst_42 = arith.constant dense<0.000000e+00> : vector<8x32xf32>
      %42 = tpu.matmul %40, %41, %cst_42 {dimension_numbers = #tpu.dot_dimension_numbers<[1], [0], [0], [1], [0, 0, 1, 1], [], []>} : vector<8x32xf32>, vector<32x32xf32>, vector<8x32xf32> -> vector<8x32xf32>
      %c0_43 = arith.constant 0 : index
      %c0_44 = arith.constant 0 : index
      %43 = vector.load %arg9[%c0_43, %c0_44] : memref<1x32xf32, #tpu.memory_space<vmem>>, vector<1x32xf32>
      %44 = vector.broadcast %43 : vector<1x32xf32> to vector<8x32xf32>
      %45 = arith.addf %42, %44 : vector<8x32xf32>
      %c0_45 = arith.constant 0 : index
      %c0_46 = arith.constant 0 : index
      %c0_47 = arith.constant 0 : index
      %46 = vector.load %arg10[%c0_45, %c0_46, %c0_47] : memref<1x8x32xf32, #tpu.memory_space<vmem>>, vector<1x8x32xf32>
      %47 = vector.shape_cast %46 : vector<1x8x32xf32> to vector<8x32xf32>
      %48 = vector.shape_cast %45 : vector<8x32xf32> to vector<1x8x32xf32>
      tpu.vector_store %arg10[%c0_45, %c0_46, %c0_47], %48 {strides = array<i32>} : memref<1x8x32xf32, #tpu.memory_space<vmem>>, vector<1x8x32xf32>,
    } else {
    }
    return
  }
  func.func @transform_0(%arg0: i32, %arg1: i32, %arg2: i32) -> (i32, i32, i32) {
    %c0_i32 = arith.constant 0 : i32
    %c0_i32_0 = arith.constant 0 : i32
    return %arg0, %arg1, %c0_i32 : i32, i32, i32
  }
  func.func @transform_1(%arg0: i32, %arg1: i32, %arg2: i32) -> (i32, i32, i32, i32) {
    %c0_i32 = arith.constant 0 : i32
    %c0_i32_0 = arith.constant 0 : i32
    %c0_i32_1 = arith.constant 0 : i32
    return %arg0, %c0_i32, %arg2, %c0_i32_0 : i32, i32, i32, i32
  }
  func.func @transform_2(%arg0: i32, %arg1: i32, %arg2: i32) -> (i32, i32, i32, i32) {
    %c0_i32 = arith.constant 0 : i32
    %c0_i32_0 = arith.constant 0 : i32
    %c0_i32_1 = arith.constant 0 : i32
    return %arg0, %c0_i32, %arg2, %c0_i32_0 : i32, i32, i32, i32
  }
  func.func @transform_3(%arg0: i32, %arg1: i32, %arg2: i32) -> (i32, i32) {
    %c0_i32 = arith.constant 0 : i32
    %c0_i32_0 = arith.constant 0 : i32
    %c0_i32_1 = arith.constant 0 : i32
    return %c0_i32, %c0_i32_0 : i32, i32
  }
  func.func @transform_4(%arg0: i32, %arg1: i32, %arg2: i32) -> (i32, i32) {
    %c0_i32 = arith.constant 0 : i32
    %c0_i32_0 = arith.constant 0 : i32
    %c0_i32_1 = arith.constant 0 : i32
    return %c0_i32, %c0_i32_0 : i32, i32
  }
  func.func @transform_5(%arg0: i32, %arg1: i32, %arg2: i32) -> (i32, i32) {
    %c0_i32 = arith.constant 0 : i32
    %c0_i32_0 = arith.constant 0 : i32
    %c0_i32_1 = arith.constant 0 : i32
    return %c0_i32, %c0_i32_0 : i32, i32
  }
  func.func @transform_6(%arg0: i32, %arg1: i32, %arg2: i32) -> (i32, i32) {
    %c0_i32 = arith.constant 0 : i32
    %c0_i32_0 = arith.constant 0 : i32
    %c0_i32_1 = arith.constant 0 : i32
    return %c0_i32, %c0_i32_0 : i32, i32
  }
  func.func @transform_7(%arg0: i32, %arg1: i32, %arg2: i32) -> (i32, i32, i32) {
    %c0_i32 = arith.constant 0 : i32
    %c0_i32_0 = arith.constant 0 : i32
    return %arg0, %arg1, %c0_i32 : i32, i32, i32
  }
}

</mosaic_0001>

<llo_original>
// kernel: multi_head_cross_attention.1
$region0: #{multi_head_cross_attention.1}
  #allocation0 [shape = 'u32[]', space=smem, size = 0x4, offset = 0x4, fixed_abs, tag = 'smem constant byte address 0x4 - core index']
  #allocation1 [shape = 'u32[144,128]{1,0:T(1,128)}', space=vmem, size = 0x12000, scoped, tag = 'internal scratch']
  #allocation2 [shape = 'f32[4,8,8]{2,1,0:T(8,128)}', space=vmem, size = 0x4000, scoped, tag = 'scratch operand']
  #allocation3 [shape = 'f32[4,8,1]{2,1,0:T(8,128)}', space=vmem, size = 0x4000, scoped, tag = 'scratch operand']
  #allocation4 [shape = 'f32[4,8,1]{2,1,0:T(8,128)}', space=vmem, size = 0x4000, scoped, tag = 'scratch operand']
  #allocation5 [shape = 'f32[4,8,8]{2,1,0:T(8,128)}', space=vmem, size = 0x4000, scoped, tag = 'scratch operand']
  %s0 = inlined_call_operand.vmem [shape: f32[2,8,32], index: 0, kind: input, shape index: {}]
  %s1 = inlined_call_operand.vmem [shape: f32[2,4,8,8], index: 1, kind: input, shape index: {}]
  %s2 = inlined_call_operand.vmem [shape: f32[2,4,8,8], index: 2, kind: input, shape index: {}]
  %s3 = inlined_call_operand.vmem [shape: f32[32,32], index: 3, kind: input, shape index: {}]
  %s4 = inlined_call_operand.vmem [shape: f32[1,32], index: 4, kind: input, shape index: {}]
  %s5 = inlined_call_operand.vmem [shape: f32[32,32], index: 5, kind: input, shape index: {}]
  %s6 = inlined_call_operand.vmem [shape: f32[1,32], index: 6, kind: input, shape index: {}]
  %s7 = inlined_call_operand.hbm [shape: f32[2,8,32], index: 7, kind: output, shape index: {}]
  %s8 = sld [smem:[#allocation0]]
  $region69: #{multi_head_cross_attention.1} parent=0
    _
  %s10 = ssub.s32 1, %s8
  %s11 = scalar_select 0, %s10, %s8
  $region1: #{multi_head_cross_attention.1} parent=0
    #allocation6 [shape = 'u8[8192]{0}', space=vmem, size = 0x2000, scoped, tag = 'output window, operand 0']
    #allocation7 [shape = 's32[2]{0}', space=sflag, size = 0x8, scoped, tag = 'scoped memory for multi_head_cross_attention.1']
    %12 = vsyncpa [#allocation7], 0
    %s13 = scalar_lea.sflag [#allocation7], 1
    %14 = vsyncpa %s13, 0
    loop: start=0, step=1, limit=4
    $region2: #{multi_head_cross_attention.1} parent=1 // loop_pre_header
      _
    $region3: #{multi_head_cross_attention.1} parent=1 // loop_header
      %s16 = sphi 0, %s20
      %p17 = scmp.ge.s32.totalorder %s16, 4
      %s23 = sphi 0, %s42
      %s24 = sphi 0, %s38
      %s25 = sphi 0, %s34
      %s26 = sphi 0, %s23
      %s27 = sphi 0, %s24
      %s28 = sphi 0, %s25
      %s29 = sphi 0, %s26
      %s30 = sphi 0, %s27
      %s31 = sphi 0, %s28
      %s47 = sphi 0, %s49
      %s50 = sphi 0, %s47
      %s51 = sphi 0, %s50
      %s67 = sphi 0, %s51
      %s75 = sphi 0, %s77
      %s78 = sphi 0, %s75
      %s79 = sphi 0, %s78
      %s95 = sphi 0, %s79
      %s103 = sphi 0, %s105
      %s106 = sphi 0, %s103
      %s107 = sphi 0, %s106
      %s123 = sphi 0, %s107
      %s127 = sphi 0, %s127
      %s129 = sphi 0, %s127
      %s130 = sphi 0, %s129
      %s144 = sphi 0, %s130
      %s148 = sphi 0, %s148
      %s150 = sphi 0, %s148
      %s151 = sphi 0, %s150
      %s165 = sphi 0, %s151
      %s169 = sphi 0, %s169
      %s171 = sphi 0, %s169
      %s172 = sphi 0, %s171
      %s186 = sphi 0, %s172
      %s190 = sphi 0, %s190
      %s192 = sphi 0, %s190
      %s193 = sphi 0, %s192
      %s207 = sphi 0, %s193
      %s215 = sphi 0, %s217
      %s218 = sphi 0, %s215
      %s219 = sphi 0, %s218
      %s235 = sphi 0, %s219
    $region4: #{multi_head_cross_attention.1} parent=1 // loop_header_branch
      %19 = sbr.rel (%p17) target = $region8
    $region5: #{multi_head_cross_attention.1} parent=1 // loop_body
      %s21 = ssub.s32 %s16, 1
      %s22 = ssub.s32 %s16, 2
      %s32 = sadd.s32 1, %s25
      %p33 = scmp.ge.s32.totalorder %s32, 1
      %s34 = scalar_select %p33, 0, %s32
      %s35 = sadd.s32 1, %s24
      %s36 = scalar_select %p33, %s35, %s24
      %p37 = scmp.ge.s32.totalorder %s36, 1
      %s38 = scalar_select %p37, 0, %s36
      %s39 = sadd.s32 1, %s23
      %s40 = scalar_select %p37, %s39, %s23
      %p41 = scmp.ge.s32.totalorder %s40, 2
      %s42 = scalar_select %p41, 0, %s40
      %s43 = ssub.s32 %s23, %s42
      %s44 = ssub.s32 %s24, %s38
      %s45 = sor.u32 %s43, %s44
      %p46 = scmp.eq.s32.totalorder %s45, 0
      %s48 = sadd.s32 %s47, 1
      %s49 = scalar_select %p46, %s47, %s48
      %p52 = pneg %p46
      %p53 = scmp.eq.s32.totalorder %s16, 1
      %p54 = por %p52, %p53
      %p55 = scmp.ne.s32.totalorder %s47, %s50
      %p56 = scmp.eq.s32.totalorder %s16, 0
      %p57 = por %p55, %p56
      %p58 = scmp.ne.s32.totalorder %s47, %s50
      %p59 = scmp.eq.s32.totalorder %s21, 1
      %p60 = por %p58, %p59
      %p61 = scmp.ne.s32.totalorder %s50, %s51
      %p62 = scmp.eq.s32.totalorder %s21, 0
      %p63 = por %p61, %p62
      %p64 = scmp.ne.s32.totalorder %s50, %s51
      %p65 = scmp.eq.s32.totalorder %s22, 1
      %p66 = por %p64, %p65
      %p68 = scmp.ne.s32.totalorder %s51, %s67
      %p69 = scmp.eq.s32.totalorder %s22, 0
      %p70 = por %p68, %p69
      %s71 = ssub.s32 %s23, %s42
      %s72 = ssub.s32 %s25, %s34
      %s73 = sor.u32 %s71, %s72
      %p74 = scmp.eq.s32.totalorder %s73, 0
      %s76 = sadd.s32 %s75, 1
      %s77 = scalar_select %p74, %s75, %s76
      %p80 = pneg %p74
      %p81 = scmp.eq.s32.totalorder %s16, 1
      %p82 = por %p80, %p81
      %p83 = scmp.ne.s32.totalorder %s75, %s78
      %p84 = scmp.eq.s32.totalorder %s16, 0
      %p85 = por %p83, %p84
      %p86 = scmp.ne.s32.totalorder %s75, %s78
      %p87 = scmp.eq.s32.totalorder %s21, 1
      %p88 = por %p86, %p87
      %p89 = scmp.ne.s32.totalorder %s78, %s79
      %p90 = scmp.eq.s32.totalorder %s21, 0
      %p91 = por %p89, %p90
      %p92 = scmp.ne.s32.totalorder %s78, %s79
      %p93 = scmp.eq.s32.totalorder %s22, 1
      %p94 = por %p92, %p93
      %p96 = scmp.ne.s32.totalorder %s79, %s95
      %p97 = scmp.eq.s32.totalorder %s22, 0
      %p98 = por %p96, %p97
      %s99 = ssub.s32 %s23, %s42
      %s100 = ssub.s32 %s25, %s34
      %s101 = sor.u32 %s99, %s100
      %p102 = scmp.eq.s32.totalorder %s101, 0
      %s104 = sadd.s32 %s103, 1
      %s105 = scalar_select %p102, %s103, %s104
      %p108 = pneg %p102
      %p109 = scmp.eq.s32.totalorder %s16, 1
      %p110 = por %p108, %p109
      %p111 = scmp.ne.s32.totalorder %s103, %s106
      %p112 = scmp.eq.s32.totalorder %s16, 0
      %p113 = por %p111, %p112
      %p114 = scmp.ne.s32.totalorder %s103, %s106
      %p115 = scmp.eq.s32.totalorder %s21, 1
      %p116 = por %p114, %p115
      %p117 = scmp.ne.s32.totalorder %s106, %s107
      %p118 = scmp.eq.s32.totalorder %s21, 0
      %p119 = por %p117, %p118
      %p120 = scmp.ne.s32.totalorder %s106, %s107
      %p121 = scmp.eq.s32.totalorder %s22, 1
      %p122 = por %p120, %p121
      %p124 = scmp.ne.s32.totalorder %s107, %s123
      %p125 = scmp.eq.s32.totalorder %s22, 0
      %p126 = por %p124, %p125
      %s128 = sadd.s32 %s127, 1
      %p131 = scmp.eq.s32.totalorder %s16, 1
      %p132 = scmp.ne.s32.totalorder %s127, %s129
      %p133 = scmp.eq.s32.totalorder %s16, 0
      %p134 = por %p132, %p133
      %p135 = scmp.ne.s32.totalorder %s127, %s129
      %p136 = scmp.eq.s32.totalorder %s21, 1
      %p137 = por %p135, %p136
      %p138 = scmp.ne.s32.totalorder %s129, %s130
      %p139 = scmp.eq.s32.totalorder %s21, 0
      %p140 = por %p138, %p139
      %p141 = scmp.ne.s32.totalorder %s129, %s130
      %p142 = scmp.eq.s32.totalorder %s22, 1
      %p143 = por %p141, %p142
      %p145 = scmp.ne.s32.totalorder %s130, %s144
      %p146 = scmp.eq.s32.totalorder %s22, 0
      %p147 = por %p145, %p146
      %s149 = sadd.s32 %s148, 1
      %p152 = scmp.eq.s32.totalorder %s16, 1
      %p153 = scmp.ne.s32.totalorder %s148, %s150
      %p154 = scmp.eq.s32.totalorder %s16, 0
      %p155 = por %p153, %p154
      %p156 = scmp.ne.s32.totalorder %s148, %s150
      %p157 = scmp.eq.s32.totalorder %s21, 1
      %p158 = por %p156, %p157
      %p159 = scmp.ne.s32.totalorder %s150, %s151
      %p160 = scmp.eq.s32.totalorder %s21, 0
      %p161 = por %p159, %p160
      %p162 = scmp.ne.s32.totalorder %s150, %s151
      %p163 = scmp.eq.s32.totalorder %s22, 1
      %p164 = por %p162, %p163
      %p166 = scmp.ne.s32.totalorder %s151, %s165
      %p167 = scmp.eq.s32.totalorder %s22, 0
      %p168 = por %p166, %p167
      %s170 = sadd.s32 %s169, 1
      %p173 = scmp.eq.s32.totalorder %s16, 1
      %p174 = scmp.ne.s32.totalorder %s169, %s171
      %p175 = scmp.eq.s32.totalorder %s16, 0
      %p176 = por %p174, %p175
      %p177 = scmp.ne.s32.totalorder %s169, %s171
      %p178 = scmp.eq.s32.totalorder %s21, 1
      %p179 = por %p177, %p178
      %p180 = scmp.ne.s32.totalorder %s171, %s172
      %p181 = scmp.eq.s32.totalorder %s21, 0
      %p182 = por %p180, %p181
      %p183 = scmp.ne.s32.totalorder %s171, %s172
      %p184 = scmp.eq.s32.totalorder %s22, 1
      %p185 = por %p183, %p184
      %p187 = scmp.ne.s32.totalorder %s172, %s186
      %p188 = scmp.eq.s32.totalorder %s22, 0
      %p189 = por %p187, %p188
      %s191 = sadd.s32 %s190, 1
      %p194 = scmp.eq.s32.totalorder %s16, 1
      %p195 = scmp.ne.s32.totalorder %s190, %s192
      %p196 = scmp.eq.s32.totalorder %s16, 0
      %p197 = por %p195, %p196
      %p198 = scmp.ne.s32.totalorder %s190, %s192
      %p199 = scmp.eq.s32.totalorder %s21, 1
      %p200 = por %p198, %p199
      %p201 = scmp.ne.s32.totalorder %s192, %s193
      %p202 = scmp.eq.s32.totalorder %s21, 0
      %p203 = por %p201, %p202
      %p204 = scmp.ne.s32.totalorder %s192, %s193
      %p205 = scmp.eq.s32.totalorder %s22, 1
      %p206 = por %p204, %p205
      %p208 = scmp.ne.s32.totalorder %s193, %s207
      %p209 = scmp.eq.s32.totalorder %s22, 0
      %p210 = por %p208, %p209
      %s211 = ssub.s32 %s23, %s42
      %s212 = ssub.s32 %s24, %s38
      %s213 = sor.u32 %s211, %s212
      %p214 = scmp.eq.s32.totalorder %s213, 0
      %s216 = sadd.s32 %s215, 1
      %s217 = scalar_select %p214, %s215, %s216
      %p220 = pneg %p214
      %p221 = scmp.eq.s32.totalorder %s16, 1
      %p222 = por %p220, %p221
      %p223 = scmp.ne.s32.totalorder %s215, %s218
      %p224 = scmp.eq.s32.totalorder %s16, 0
      %p225 = por %p223, %p224
      %p226 = scmp.ne.s32.totalorder %s215, %s218
      %p227 = scmp.eq.s32.totalorder %s21, 1
      %p228 = por %p226, %p227
      %p229 = scmp.ne.s32.totalorder %s218, %s219
      %p230 = scmp.eq.s32.totalorder %s21, 0
      %p231 = por %p229, %p230
      %p232 = scmp.ne.s32.totalorder %s218, %s219
      %p233 = scmp.eq.s32.totalorder %s22, 1
      %p234 = por %p232, %p233
      %p236 = scmp.ne.s32.totalorder %s219, %s235
      %p237 = scmp.eq.s32.totalorder %s22, 0
      %p238 = por %p236, %p237
      %p239 = scmp.le.s32.totalorder 1, %s16
      %p240 = scmp.lt.s32.totalorder %s16, 3
      %p241 = pnand %p239, %p240
      %p242 = pneg %p241
      // Predicated region
      $region9: #{multi_head_cross_attention.1} parent=5 // pred_check
        _
      $region10: #{multi_head_cross_attention.1} parent=5 // pred_check_branch
        %244 = sbr.rel (%p241) target = $region12
      $region11: #{multi_head_cross_attention.1} parent=5 // pred_region
        %s245 = ssub.s32 %s16, 1
        // Predicated region
        $region13: #{multi_head_cross_attention.1} parent=11 // pred_check
          %p246 = pneg %p140
        $region14: #{multi_head_cross_attention.1} parent=11 // pred_check_branch
          %248 = sbr.rel (%p246) target = $region16
        $region15: #{multi_head_cross_attention.1} parent=11 // pred_region
          _
        $region16: #{multi_head_cross_attention.1} parent=11 // pred_fallthru
          _
        // Predicated region
        $region17: #{multi_head_cross_attention.1} parent=11 // pred_check
          %p249 = pneg %p161
        $region18: #{multi_head_cross_attention.1} parent=11 // pred_check_branch
          %251 = sbr.rel (%p249) target = $region20
        $region19: #{multi_head_cross_attention.1} parent=11 // pred_region
          _
        $region20: #{multi_head_cross_attention.1} parent=11 // pred_fallthru
          _
        // Predicated region
        $region21: #{multi_head_cross_attention.1} parent=11 // pred_check
          %p252 = pneg %p182
        $region22: #{multi_head_cross_attention.1} parent=11 // pred_check_branch
          %254 = sbr.rel (%p252) target = $region24
        $region23: #{multi_head_cross_attention.1} parent=11 // pred_region
          _
        $region24: #{multi_head_cross_attention.1} parent=11 // pred_fallthru
          _
        // Predicated region
        $region25: #{multi_head_cross_attention.1} parent=11 // pred_check
          %p255 = pneg %p203
        $region26: #{multi_head_cross_attention.1} parent=11 // pred_check_branch
          %257 = sbr.rel (%p255) target = $region28
        $region27: #{multi_head_cross_attention.1} parent=11 // pred_region
          _
        $region28: #{multi_head_cross_attention.1} parent=11 // pred_fallthru
          _
      $region12: #{multi_head_cross_attention.1} parent=5 // pred_fallthru
        _
      %p258 = scmp.lt.s32.totalorder %s16, 2
      // Predicated region
      $region29: #{multi_head_cross_attention.1} parent=5 // pred_check
        %p259 = pneg %p258
      $region30: #{multi_head_cross_attention.1} parent=5 // pred_check_branch
        %261 = sbr.rel (%p259) target = $region32
      $region31: #{multi_head_cross_attention.1} parent=5 // pred_region
        // Predicated region
        $region33: #{multi_head_cross_attention.1} parent=31 // pred_check
          %p262 = pneg %p57
        $region34: #{multi_head_cross_attention.1} parent=31 // pred_check_branch
          %264 = sbr.rel (%p262) target = $region36
        $region35: #{multi_head_cross_attention.1} parent=31 // pred_region
          %p265 = scmp.lt.s32.totalorder %s23, 1
          %s266 = scalar_select %p265, %s23, 1
          %p267 = scmp.lt.s32.totalorder %s24, 0
          %s268 = scalar_select %p267, %s24, 0
          %s269 = sadd.s32 %s268, %s266
          %s270 = smul.addr %s269, 8
          %s271 = scalar_lea.vmem %s0, %s270
        $region36: #{multi_head_cross_attention.1} parent=31 // pred_fallthru
          _
        // Predicated region
        $region37: #{multi_head_cross_attention.1} parent=31 // pred_check
          %p272 = pneg %p85
        $region38: #{multi_head_cross_attention.1} parent=31 // pred_check_branch
          %274 = sbr.rel (%p272) target = $region40
        $region39: #{multi_head_cross_attention.1} parent=31 // pred_region
          %p275 = scmp.lt.s32.totalorder %s23, 1
          %s276 = scalar_select %p275, %s23, 1
          %p277 = scmp.lt.s32.totalorder %s25, 0
          %s278 = scalar_select %p277, %s25, 0
          %s279 = smul.addr %s276, 4
          %s280 = sadd.s32 %s278, %s279
          %s281 = smul.addr %s280, 8
          %s282 = scalar_lea.vmem %s1, %s281
        $region40: #{multi_head_cross_attention.1} parent=31 // pred_fallthru
          _
        // Predicated region
        $region41: #{multi_head_cross_attention.1} parent=31 // pred_check
          %p283 = pneg %p113
        $region42: #{multi_head_cross_attention.1} parent=31 // pred_check_branch
          %285 = sbr.rel (%p283) target = $region44
        $region43: #{multi_head_cross_attention.1} parent=31 // pred_region
          %p286 = scmp.lt.s32.totalorder %s23, 1
          %s287 = scalar_select %p286, %s23, 1
          %p288 = scmp.lt.s32.totalorder %s25, 0
          %s289 = scalar_select %p288, %s25, 0
          %s290 = smul.addr %s287, 4
          %s291 = sadd.s32 %s289, %s290
          %s292 = smul.addr %s291, 8
          %s293 = scalar_lea.vmem %s2, %s292
        $region44: #{multi_head_cross_attention.1} parent=31 // pred_fallthru
          _
      $region32: #{multi_head_cross_attention.1} parent=5 // pred_fallthru
        _
      %p294 = scmp.le.s32.totalorder 1, %s16
      %p295 = scmp.lt.s32.totalorder %s16, 3
      %p296 = pnand %p294, %p295
      %p297 = pneg %p296
      // Predicated region
      $region45: #{multi_head_cross_attention.1} parent=5 // pred_check
        _
      $region46: #{multi_head_cross_attention.1} parent=5 // pred_check_branch
        %299 = sbr.rel (%p296) target = $region48
      $region47: #{multi_head_cross_attention.1} parent=5 // pred_region
        %s300 = ssub.s32 %s16, 1
        %p301 = scmp.lt.s32.totalorder %s26, 1
        %s302 = scalar_select %p301, %s26, 1
        %p303 = scmp.lt.s32.totalorder %s27, 0
        %s304 = scalar_select %p303, %s27, 0
        %s305 = sadd.s32 %s304, %s302
        %s306 = smul.addr %s305, 8
        %s307 = scalar_lea.vmem %s0, %s306
        %p308 = pneg %p63
        %p309 = pneg %p60
        %p310 = scmp.lt.s32.totalorder %s26, 1
        %s311 = scalar_select %p310, %s26, 1
        %p312 = scmp.lt.s32.totalorder %s28, 0
        %s313 = scalar_select %p312, %s28, 0
        %s314 = smul.addr %s311, 4
        %s315 = sadd.s32 %s313, %s314
        %s316 = smul.addr %s315, 8
        %s317 = scalar_lea.vmem %s1, %s316
        %p318 = pneg %p91
        %p319 = pneg %p88
        %p320 = scmp.lt.s32.totalorder %s26, 1
        %s321 = scalar_select %p320, %s26, 1
        %p322 = scmp.lt.s32.totalorder %s28, 0
        %s323 = scalar_select %p322, %s28, 0
        %s324 = smul.addr %s321, 4
        %s325 = sadd.s32 %s323, %s324
        %s326 = smul.addr %s325, 8
        %s327 = scalar_lea.vmem %s2, %s326
        %p328 = pneg %p119
        %p329 = pneg %p116
        %p330 = pneg %p140
        %p331 = pneg %p137
        %p332 = pneg %p161
        %p333 = pneg %p158
        %p334 = pneg %p182
        %p335 = pneg %p179
        %p336 = pneg %p203
        %p337 = pneg %p200
        %p338 = pneg %p231
        %p339 = pneg %p228
        %s340 = sand.u32 %s218, 1
        %s341 = scalar_lea.sflag [#allocation7], %s340
        %s342 = sand.u32 %s218, 1
        %s343 = smul.addr %s342, 8
        %s344 = scalar_lea.vmem [#allocation6], %s343
        %p345 = scmp.lt.s32.totalorder %s26, 1
        %s346 = scalar_select %p345, %s26, 1
        %p347 = scmp.lt.s32.totalorder %s27, 0
        %s348 = scalar_select %p347, %s27, 0
        %s349 = sadd.s32 %s348, %s346
        %s350 = smul.addr %s349, 8
        %s351 = scalar_lea.vmem %s0, %s350
        %p352 = scmp.lt.s32.totalorder %s26, 1
        %s353 = scalar_select %p352, %s26, 1
        %p354 = scmp.lt.s32.totalorder %s28, 0
        %s355 = scalar_select %p354, %s28, 0
        %s356 = smul.addr %s353, 4
        %s357 = sadd.s32 %s355, %s356
        %s358 = smul.addr %s357, 8
        %s359 = scalar_lea.vmem %s1, %s358
        %p360 = scmp.lt.s32.totalorder %s26, 1
        %s361 = scalar_select %p360, %s26, 1
        %p362 = scmp.lt.s32.totalorder %s28, 0
        %s363 = scalar_select %p362, %s28, 0
        %s364 = smul.addr %s361, 4
        %s365 = sadd.s32 %s363, %s364
        %s366 = smul.addr %s365, 8
        %s367 = scalar_lea.vmem %s2, %s366
        %p368 = scmp.eq.s32.totalorder %s28, 0
        // Predicated region
        $region49: #{multi_head_cross_attention.1} parent=47 // pred_check
          %p369 = pneg %p368
        $region50: #{multi_head_cross_attention.1} parent=47 // pred_check_branch
          %371 = sbr.rel (%p369) target = $region52
        $region51: #{multi_head_cross_attention.1} parent=47 // pred_region
          %v372 = vld [vmem:[%s351] sm:$0xff]
          %v373 = vld [vmem:[%s3] sm:$0xff]
          %v374 = vld [vmem:[%s3 + $0x8] sm:$0xff]
          %v375 = vld [vmem:[%s3 + $0x10] sm:$0xff]
          %v376 = vld [vmem:[%s3 + $0x18] sm:$0xff]
          %v377 = vld [vmem:[%s4] sm:$0x1]
          %v379 = vlaneseq
          %v380 = vshrl.u32 %v379, 7
          %v381 = vsub.s32 0, %v380
          %v382 = vrot.slane %v377, %v381
          %vm384 = vcmask 261120
          %v386 = vsel %vm384, %v372, 0
          %388 = vmatprep.subr.mxu0 0.0
          %389 = vmatpush1.msra.mxu0 %v373
          %390 = vmatprep.subr.mxu0 0.0
          %391 = vmatpush1.msra.mxu0 %v374
          %392 = vmatprep.subr.mxu0 0.0
          %393 = vmatpush1.msra.mxu0 %v375
          %394 = vmatprep.subr.mxu0 0.0
          %395 = vmatpush1.msra.mxu0 %v376
          %396 = vmatprep.subr.mxu0 0.0
          %397 = vmatpush1.msra.mxu0 0.0
          %398 = vmatprep.subr.mxu0 0.0
          %399 = vmatpush1.msra.mxu0 0.0
          %400 = vmatprep.subr.mxu0 0.0
          %401 = vmatpush1.msra.mxu0 0.0
          %402 = vmatprep.subr.mxu0 0.0
          %403 = vmatpush1.msra.mxu0 0.0
          %404 = vmatprep.subr.mxu0 0.0
          %405 = vmatpush1.msra.mxu0 0.0
          %406 = vmatprep.subr.mxu0 0.0
          %407 = vmatpush1.msra.mxu0 0.0
          %408 = vmatprep.subr.mxu0 0.0
          %409 = vmatpush1.msra.mxu0 0.0
          %410 = vmatprep.subr.mxu0 0.0
          %411 = vmatpush1.msra.mxu0 0.0
          %412 = vmatprep.subr.mxu0 0.0
          %413 = vmatpush1.msra.mxu0 0.0
          %414 = vmatprep.subr.mxu0 0.0
          %415 = vmatpush1.msra.mxu0 0.0
          %416 = vmatprep.subr.mxu0 0.0
          %417 = vmatpush1.msra.mxu0 0.0
          %418 = vmatprep.subr.mxu0 0.0
          %419 = vmatpush1.msra.mxu0 0.0
          %420 = vmatprep.subr.mxu0 0.0
          %421 = vmatpush1.msra.mxu0 0.0
          %422 = vmatprep.subr.mxu0 0.0
          %423 = vmatpush1.msra.mxu0 0.0
          %424 = vmatprep.subr.mxu0 0.0
          %425 = vmatpush1.msra.mxu0 0.0
          %426 = vmatprep.subr.mxu0 0.0
          %427 = vmatpush1.msra.mxu0 0.0
          %428 = vmatprep.subr.mxu0 0.0
          %429 = vmatpush1.msra.mxu0 0.0
          %430 = vmatprep.subr.mxu0 0.0
          %431 = vmatpush1.msra.mxu0 0.0
          %432 = vmatprep.subr.mxu0 0.0
          %433 = vmatpush1.msra.mxu0 0.0
          %434 = vmatprep.subr.mxu0 0.0
          %435 = vmatpush1.msra.mxu0 0.0
          %436 = vmatprep.subr.mxu0 0.0
          %437 = vmatpush1.msra.mxu0 0.0
          %438 = vmatprep.subr.mxu0 0.0
          %439 = vmatpush1.msra.mxu0 0.0
          %440 = vmatprep.subr.mxu0 0.0
          %441 = vmatpush1.msra.mxu0 0.0
          %442 = vmatprep.subr.mxu0 0.0
          %443 = vmatpush1.msra.mxu0 0.0
          %444 = vmatprep.subr.mxu0 0.0
          %445 = vmatpush1.msra.mxu0 0.0
          %446 = vmatprep.subr.mxu0 0.0
          %447 = vmatpush1.msra.mxu0 0.0
          %448 = vmatprep.subr.mxu0 0.0
          %449 = vmatpush1.msra.mxu0 0.0
          %450 = vmatprep.subr.mxu0 0.0
          %451 = vmatpush1.msra.mxu0 0.0
          %452 = vmatprep.mubr.f32.mxu0 0.0
          %453 = vmatmul.mubr.f32.gmra.mrb[0].mxu0 %v386
          %v454 = vpop.f32.mrb[0].mxu0
          %v455 = vadd.f32 %v382, %v454
          %v456 = vpop.f32.mrb[0].mxu0
          %457 = vdwg.mxu0
          %459 = vrot.lane.b32.xlu0 %v455, 120
          %v460 = vpop.permute.xlu0 %459
          %462 = vrot.lane.b32.xlu0 %v455, 112
          %v463 = vpop.permute.xlu0 %462
          %465 = vrot.lane.b32.xlu0 %v455, 104
          %v466 = vpop.permute.xlu0 %465
          %v468 = vcombine.low %v455, %v463
          %v469 = vcombine.high %v455, %v463
          %v471 = vunpack.c.l.s4 1983009808
          %v472 = vunpack.c.0.s8 %v471
          %v473 = vlaneseq
          %v474 = vshrl.u32 %v473, 7
          %v475 = vsub.s32 %v472, %v474
          %v476 = vrot.slane %v468, %v475
          %v478 = vunpack.c.l.s4 1983009808
          %v479 = vunpack.c.0.s8 %v478
          %v480 = vlaneseq
          %v481 = vshrl.u32 %v480, 7
          %v482 = vsub.s32 %v479, %v481
          %v483 = vrot.slane %v469, %v482
          %v484 = vcombine.low %v460, %v466
          %v485 = vcombine.high %v460, %v466
          %v487 = vunpack.c.l.s4 1983009808
          %v488 = vunpack.c.0.s8 %v487
          %v489 = vlaneseq
          %v490 = vshrl.u32 %v489, 7
          %v491 = vsub.s32 %v488, %v490
          %v492 = vrot.slane %v484, %v491
          %v494 = vunpack.c.l.s4 1983009808
          %v495 = vunpack.c.0.s8 %v494
          %v496 = vlaneseq
          %v497 = vshrl.u32 %v496, 7
          %v498 = vsub.s32 %v495, %v497
          %v499 = vrot.slane %v485, %v498
          %v500 = vcombine.low %v476, %v492
          %v501 = vcombine.high %v476, %v492
          %v503 = vunpack.c.l.s4 1934713408
          %v504 = vunpack.c.0.s8 %v503
          %v505 = vlaneseq
          %v506 = vshrl.u32 %v505, 7
          %v507 = vsub.s32 %v504, %v506
          %v508 = vrot.slane %v500, %v507
          %v510 = vunpack.c.l.s4 1934713408
          %v511 = vunpack.c.0.s8 %v510
          %v512 = vlaneseq
          %v513 = vshrl.u32 %v512, 7
          %v514 = vsub.s32 %v511, %v513
          %v515 = vrot.slane %v501, %v514
          %v516 = vcombine.low %v483, %v499
          %v517 = vcombine.high %v483, %v499
          %v519 = vunpack.c.l.s4 1934713408
          %v520 = vunpack.c.0.s8 %v519
          %v521 = vlaneseq
          %v522 = vshrl.u32 %v521, 7
          %v523 = vsub.s32 %v520, %v522
          %v524 = vrot.slane %v516, %v523
          %v526 = vunpack.c.l.s4 1934713408
          %v527 = vunpack.c.0.s8 %v526
          %v528 = vlaneseq
          %v529 = vshrl.u32 %v528, 7
          %v530 = vsub.s32 %v527, %v529
          %v531 = vrot.slane %v517, %v530
          %v532 = vcombine.high %v508, 0.0
          %v533 = vcombine.high %v515, 0.0
          %v534 = vcombine.high %v524, 0.0
          %v535 = vcombine.high %v531, 0.0
          %v536 = vcombine.low %v508, %v515
          %v538 = vunpack.c.l.s4 1983009808
          %v539 = vunpack.c.0.s8 %v538
          %v540 = vlaneseq
          %v541 = vshrl.u32 %v540, 7
          %v542 = vsub.s32 %v539, %v541
          %v543 = vrot.slane %v536, %v542
          %v544 = vcombine.low %v532, %v533
          %v546 = vunpack.c.l.s4 1983009808
          %v547 = vunpack.c.0.s8 %v546
          %v548 = vlaneseq
          %v549 = vshrl.u32 %v548, 7
          %v550 = vsub.s32 %v547, %v549
          %v551 = vrot.slane %v544, %v550
          %v552 = vcombine.low %v524, %v531
          %v554 = vunpack.c.l.s4 1983009808
          %v555 = vunpack.c.0.s8 %v554
          %v556 = vlaneseq
          %v557 = vshrl.u32 %v556, 7
          %v558 = vsub.s32 %v555, %v557
          %v559 = vrot.slane %v552, %v558
          %v560 = vcombine.low %v534, %v535
          %v562 = vunpack.c.l.s4 1983009808
          %v563 = vunpack.c.0.s8 %v562
          %v564 = vlaneseq
          %v565 = vshrl.u32 %v564, 7
          %v566 = vsub.s32 %v563, %v565
          %v567 = vrot.slane %v560, %v566
          %v568 = vcombine.low %v543, %v551
          %v569 = vcombine.high %v543, %v551
          %v571 = vunpack.c.l.s4 1934713408
          %v572 = vunpack.c.0.s8 %v571
          %v573 = vlaneseq
          %v574 = vshrl.u32 %v573, 7
          %v575 = vsub.s32 %v572, %v574
          %v576 = vrot.slane %v568, %v575
          %v578 = vunpack.c.l.s4 1934713408
          %v579 = vunpack.c.0.s8 %v578
          %v580 = vlaneseq
          %v581 = vshrl.u32 %v580, 7
          %v582 = vsub.s32 %v579, %v581
          %v583 = vrot.slane %v569, %v582
          %v584 = vcombine.low %v559, %v567
          %v585 = vcombine.high %v559, %v567
          %v587 = vunpack.c.l.s4 1934713408
          %v588 = vunpack.c.0.s8 %v587
          %v589 = vlaneseq
          %v590 = vshrl.u32 %v589, 7
          %v591 = vsub.s32 %v588, %v590
          %v592 = vrot.slane %v584, %v591
          %v594 = vunpack.c.l.s4 1934713408
          %v595 = vunpack.c.0.s8 %v594
          %v596 = vlaneseq
          %v597 = vshrl.u32 %v596, 7
          %v598 = vsub.s32 %v595, %v597
          %v599 = vrot.slane %v585, %v598
          %v600 = vcombine.low %v576, %v592
          %v601 = vcombine.high %v576, %v592
          %v602 = vcombine.low %v583, %v599
          %v603 = vcombine.high %v583, %v599
          %vm604 = vcmask 64512
          %605 = vst.msk [vmem:[#allocation2] sm:$0xff] %vm604, %v600
          %606 = vst.msk [vmem:[#allocation2 + $0x8] sm:$0xff] %vm604, %v601
          %607 = vst.msk [vmem:[#allocation2 + $0x10] sm:$0xff] %vm604, %v602
          %608 = vst.msk [vmem:[#allocation2 + $0x18] sm:$0xff] %vm604, %v603
          %vm609 = vcmask 7168
          %610 = vst.msk [vmem:[#allocation3] sm:$0xff] %vm609, -inf
          %611 = vst.msk [vmem:[#allocation3 + $0x8] sm:$0xff] %vm609, -inf
          %612 = vst.msk [vmem:[#allocation3 + $0x10] sm:$0xff] %vm609, -inf
          %613 = vst.msk [vmem:[#allocation3 + $0x18] sm:$0xff] %vm609, -inf
          %614 = vst.msk [vmem:[#allocation4] sm:$0xff] %vm609, 0.0
          %615 = vst.msk [vmem:[#allocation4 + $0x8] sm:$0xff] %vm609, 0.0
          %616 = vst.msk [vmem:[#allocation4 + $0x10] sm:$0xff] %vm609, 0.0
          %617 = vst.msk [vmem:[#allocation4 + $0x18] sm:$0xff] %vm609, 0.0
          %618 = vst.msk [vmem:[#allocation5] sm:$0xff] %vm604, 0.0
          %619 = vst.msk [vmem:[#allocation5 + $0x8] sm:$0xff] %vm604, 0.0
          %620 = vst.msk [vmem:[#allocation5 + $0x10] sm:$0xff] %vm604, 0.0
          %621 = vst.msk [vmem:[#allocation5 + $0x18] sm:$0xff] %vm604, 0.0
        $region52: #{multi_head_cross_attention.1} parent=47 // pred_fallthru
          _
        %v622 = vld [vmem:[%s359] sm:$0xff]
        %v623 = vld [vmem:[%s359 + $0x8] sm:$0xff]
        %v624 = vld [vmem:[%s359 + $0x10] sm:$0xff]
        %v625 = vld [vmem:[%s359 + $0x18] sm:$0xff]
        %v626 = vld [vmem:[%s367] sm:$0xff]
        %v627 = vld [vmem:[%s367 + $0x8] sm:$0xff]
        %v628 = vld [vmem:[%s367 + $0x10] sm:$0xff]
        %v629 = vld [vmem:[%s367 + $0x18] sm:$0xff]
        %v630 = vld [vmem:[#allocation2] sm:$0xff]
        %v631 = vld [vmem:[#allocation2 + $0x8] sm:$0xff]
        %v632 = vld [vmem:[#allocation2 + $0x10] sm:$0xff]
        %v633 = vld [vmem:[#allocation2 + $0x18] sm:$0xff]
        %vm634 = vcmask 64512
        %v636 = vsel %vm634, %v630, 0
        %v639 = vsel %vm634, %v622, 0
        %641 = vmatprep.subr.mxu0 0.0
        %642 = vmatpush1.xpose.msra.mxu0 %v639
        %643 = vmatprep.subr.mxu0 0.0
        %644 = vmatpush1.xpose.msra.mxu0 0.0
        %645 = vmatprep.subr.mxu0 0.0
        %646 = vmatpush1.xpose.msra.mxu0 0.0
        %647 = vmatprep.subr.mxu0 0.0
        %648 = vmatpush1.xpose.msra.mxu0 0.0
        %649 = vmatprep.subr.mxu0 0.0
        %650 = vmatpush1.xpose.msra.mxu0 0.0
        %651 = vmatprep.subr.mxu0 0.0
        %652 = vmatpush1.xpose.msra.mxu0 0.0
        %653 = vmatprep.subr.mxu0 0.0
        %654 = vmatpush1.xpose.msra.mxu0 0.0
        %655 = vmatprep.subr.mxu0 0.0
        %656 = vmatpush1.xpose.msra.mxu0 0.0
        %657 = vmatprep.subr.mxu0 0.0
        %658 = vmatpush1.xpose.msra.mxu0 0.0
        %659 = vmatprep.subr.mxu0 0.0
        %660 = vmatpush1.xpose.msra.mxu0 0.0
        %661 = vmatprep.subr.mxu0 0.0
        %662 = vmatpush1.xpose.msra.mxu0 0.0
        %663 = vmatprep.subr.mxu0 0.0
        %664 = vmatpush1.xpose.msra.mxu0 0.0
        %665 = vmatprep.subr.mxu0 0.0
        %666 = vmatpush1.xpose.msra.mxu0 0.0
        %667 = vmatprep.subr.mxu0 0.0
        %668 = vmatpush1.xpose.msra.mxu0 0.0
        %669 = vmatprep.subr.mxu0 0.0
        %670 = vmatpush1.xpose.msra.mxu0 0.0
        %671 = vmatprep.subr.mxu0 0.0
        %672 = vmatpush1.xpose.msra.mxu0 0.0
        %673 = vmatprep.subr.mxu0 0.0
        %674 = vmatpush1.xpose.msra.mxu0 0.0
        %675 = vmatprep.subr.mxu0 0.0
        %676 = vmatpush1.xpose.msra.mxu0 0.0
        %677 = vmatprep.subr.mxu0 0.0
        %678 = vmatpush1.xpose.msra.mxu0 0.0
        %679 = vmatprep.subr.mxu0 0.0
        %680 = vmatpush1.xpose.msra.mxu0 0.0
        %681 = vmatprep.subr.mxu0 0.0
        %682 = vmatpush1.xpose.msra.mxu0 0.0
        %683 = vmatprep.subr.mxu0 0.0
        %684 = vmatpush1.xpose.msra.mxu0 0.0
        %685 = vmatprep.subr.mxu0 0.0
        %686 = vmatpush1.xpose.msra.mxu0 0.0
        %687 = vmatprep.subr.mxu0 0.0
        %688 = vmatpush1.xpose.msra.mxu0 0.0
        %689 = vmatprep.subr.mxu0 0.0
        %690 = vmatpush1.xpose.msra.mxu0 0.0
        %691 = vmatprep.subr.mxu0 0.0
        %692 = vmatpush1.xpose.msra.mxu0 0.0
        %693 = vmatprep.subr.mxu0 0.0
        %694 = vmatpush1.xpose.msra.mxu0 0.0
        %695 = vmatprep.subr.mxu0 0.0
        %696 = vmatpush1.xpose.msra.mxu0 0.0
        %697 = vmatprep.subr.mxu0 0.0
        %698 = vmatpush1.xpose.msra.mxu0 0.0
        %699 = vmatprep.subr.mxu0 0.0
        %700 = vmatpush1.xpose.msra.mxu0 0.0
        %701 = vmatprep.subr.mxu0 0.0
        %702 = vmatpush1.xpose.msra.mxu0 0.0
        %703 = vmatprep.subr.mxu0 0.0
        %704 = vmatpush1.xpose.msra.mxu0 0.0
        %705 = vmatprep.mubr.f32.mxu0 0.0
        %706 = vmatmul.mubr.f32.gmra.mrb[0].mxu0 %v636
        %v707 = vpop.f32.mrb[0].mxu0
        %v708 = vadd.f32 0.0, %v707
        %v709 = vpop.f32.mrb[0].mxu0
        %710 = vdwg.mxu0
        %v712 = vsel %vm634, %v631, 0
        %v715 = vsel %vm634, %v623, 0
        %717 = vmatprep.subr.mxu0 0.0
        %718 = vmatpush1.xpose.msra.mxu0 %v715
        %719 = vmatprep.subr.mxu0 0.0
        %720 = vmatpush1.xpose.msra.mxu0 0.0
        %721 = vmatprep.subr.mxu0 0.0
        %722 = vmatpush1.xpose.msra.mxu0 0.0
        %723 = vmatprep.subr.mxu0 0.0
        %724 = vmatpush1.xpose.msra.mxu0 0.0
        %725 = vmatprep.subr.mxu0 0.0
        %726 = vmatpush1.xpose.msra.mxu0 0.0
        %727 = vmatprep.subr.mxu0 0.0
        %728 = vmatpush1.xpose.msra.mxu0 0.0
        %729 = vmatprep.subr.mxu0 0.0
        %730 = vmatpush1.xpose.msra.mxu0 0.0
        %731 = vmatprep.subr.mxu0 0.0
        %732 = vmatpush1.xpose.msra.mxu0 0.0
        %733 = vmatprep.subr.mxu0 0.0
        %734 = vmatpush1.xpose.msra.mxu0 0.0
        %735 = vmatprep.subr.mxu0 0.0
        %736 = vmatpush1.xpose.msra.mxu0 0.0
        %737 = vmatprep.subr.mxu0 0.0
        %738 = vmatpush1.xpose.msra.mxu0 0.0
        %739 = vmatprep.subr.mxu0 0.0
        %740 = vmatpush1.xpose.msra.mxu0 0.0
        %741 = vmatprep.subr.mxu0 0.0
        %742 = vmatpush1.xpose.msra.mxu0 0.0
        %743 = vmatprep.subr.mxu0 0.0
        %744 = vmatpush1.xpose.msra.mxu0 0.0
        %745 = vmatprep.subr.mxu0 0.0
        %746 = vmatpush1.xpose.msra.mxu0 0.0
        %747 = vmatprep.subr.mxu0 0.0
        %748 = vmatpush1.xpose.msra.mxu0 0.0
        %749 = vmatprep.subr.mxu0 0.0
        %750 = vmatpush1.xpose.msra.mxu0 0.0
        %751 = vmatprep.subr.mxu0 0.0
        %752 = vmatpush1.xpose.msra.mxu0 0.0
        %753 = vmatprep.subr.mxu0 0.0
        %754 = vmatpush1.xpose.msra.mxu0 0.0
        %755 = vmatprep.subr.mxu0 0.0
        %756 = vmatpush1.xpose.msra.mxu0 0.0
        %757 = vmatprep.subr.mxu0 0.0
        %758 = vmatpush1.xpose.msra.mxu0 0.0
        %759 = vmatprep.subr.mxu0 0.0
        %760 = vmatpush1.xpose.msra.mxu0 0.0
        %761 = vmatprep.subr.mxu0 0.0
        %762 = vmatpush1.xpose.msra.mxu0 0.0
        %763 = vmatprep.subr.mxu0 0.0
        %764 = vmatpush1.xpose.msra.mxu0 0.0
        %765 = vmatprep.subr.mxu0 0.0
        %766 = vmatpush1.xpose.msra.mxu0 0.0
        %767 = vmatprep.subr.mxu0 0.0
        %768 = vmatpush1.xpose.msra.mxu0 0.0
        %769 = vmatprep.subr.mxu0 0.0
        %770 = vmatpush1.xpose.msra.mxu0 0.0
        %771 = vmatprep.subr.mxu0 0.0
        %772 = vmatpush1.xpose.msra.mxu0 0.0
        %773 = vmatprep.subr.mxu0 0.0
        %774 = vmatpush1.xpose.msra.mxu0 0.0
        %775 = vmatprep.subr.mxu0 0.0
        %776 = vmatpush1.xpose.msra.mxu0 0.0
        %777 = vmatprep.subr.mxu0 0.0
        %778 = vmatpush1.xpose.msra.mxu0 0.0
        %779 = vmatprep.subr.mxu0 0.0
        %780 = vmatpush1.xpose.msra.mxu0 0.0
        %781 = vmatprep.mubr.f32.mxu0 0.0
        %782 = vmatmul.mubr.f32.gmra.mrb[0].mxu0 %v712
        %v783 = vpop.f32.mrb[0].mxu0
        %v784 = vadd.f32 0.0, %v783
        %v785 = vpop.f32.mrb[0].mxu0
        %786 = vdwg.mxu0
        %v788 = vsel %vm634, %v632, 0
        %v791 = vsel %vm634, %v624, 0
        %793 = vmatprep.subr.mxu0 0.0
        %794 = vmatpush1.xpose.msra.mxu0 %v791
        %795 = vmatprep.subr.mxu0 0.0
        %796 = vmatpush1.xpose.msra.mxu0 0.0
        %797 = vmatprep.subr.mxu0 0.0
        %798 = vmatpush1.xpose.msra.mxu0 0.0
        %799 = vmatprep.subr.mxu0 0.0
        %800 = vmatpush1.xpose.msra.mxu0 0.0
        %801 = vmatprep.subr.mxu0 0.0
        %802 = vmatpush1.xpose.msra.mxu0 0.0
        %803 = vmatprep.subr.mxu0 0.0
        %804 = vmatpush1.xpose.msra.mxu0 0.0
        %805 = vmatprep.subr.mxu0 0.0
        %806 = vmatpush1.xpose.msra.mxu0 0.0
        %807 = vmatprep.subr.mxu0 0.0
        %808 = vmatpush1.xpose.msra.mxu0 0.0
        %809 = vmatprep.subr.mxu0 0.0
        %810 = vmatpush1.xpose.msra.mxu0 0.0
        %811 = vmatprep.subr.mxu0 0.0
        %812 = vmatpush1.xpose.msra.mxu0 0.0
        %813 = vmatprep.subr.mxu0 0.0
        %814 = vmatpush1.xpose.msra.mxu0 0.0
        %815 = vmatprep.subr.mxu0 0.0
        %816 = vmatpush1.xpose.msra.mxu0 0.0
        %817 = vmatprep.subr.mxu0 0.0
        %818 = vmatpush1.xpose.msra.mxu0 0.0
        %819 = vmatprep.subr.mxu0 0.0
        %820 = vmatpush1.xpose.msra.mxu0 0.0
        %821 = vmatprep.subr.mxu0 0.0
        %822 = vmatpush1.xpose.msra.mxu0 0.0
        %823 = vmatprep.subr.mxu0 0.0
        %824 = vmatpush1.xpose.msra.mxu0 0.0
        %825 = vmatprep.subr.mxu0 0.0
        %826 = vmatpush1.xpose.msra.mxu0 0.0
        %827 = vmatprep.subr.mxu0 0.0
        %828 = vmatpush1.xpose.msra.mxu0 0.0
        %829 = vmatprep.subr.mxu0 0.0
        %830 = vmatpush1.xpose.msra.mxu0 0.0
        %831 = vmatprep.subr.mxu0 0.0
        %832 = vmatpush1.xpose.msra.mxu0 0.0
        %833 = vmatprep.subr.mxu0 0.0
        %834 = vmatpush1.xpose.msra.mxu0 0.0
        %835 = vmatprep.subr.mxu0 0.0
        %836 = vmatpush1.xpose.msra.mxu0 0.0
        %837 = vmatprep.subr.mxu0 0.0
        %838 = vmatpush1.xpose.msra.mxu0 0.0
        %839 = vmatprep.subr.mxu0 0.0
        %840 = vmatpush1.xpose.msra.mxu0 0.0
        %841 = vmatprep.subr.mxu0 0.0
        %842 = vmatpush1.xpose.msra.mxu0 0.0
        %843 = vmatprep.subr.mxu0 0.0
        %844 = vmatpush1.xpose.msra.mxu0 0.0
        %845 = vmatprep.subr.mxu0 0.0
        %846 = vmatpush1.xpose.msra.mxu0 0.0
        %847 = vmatprep.subr.mxu0 0.0
        %848 = vmatpush1.xpose.msra.mxu0 0.0
        %849 = vmatprep.subr.mxu0 0.0
        %850 = vmatpush1.xpose.msra.mxu0 0.0
        %851 = vmatprep.subr.mxu0 0.0
        %852 = vmatpush1.xpose.msra.mxu0 0.0
        %853 = vmatprep.subr.mxu0 0.0
        %854 = vmatpush1.xpose.msra.mxu0 0.0
        %855 = vmatprep.subr.mxu0 0.0
        %856 = vmatpush1.xpose.msra.mxu0 0.0
        %857 = vmatprep.mubr.f32.mxu0 0.0
        %858 = vmatmul.mubr.f32.gmra.mrb[0].mxu0 %v788
        %v859 = vpop.f32.mrb[0].mxu0
        %v860 = vadd.f32 0.0, %v859
        %v861 = vpop.f32.mrb[0].mxu0
        %862 = vdwg.mxu0
        %v864 = vsel %vm634, %v633, 0
        %v867 = vsel %vm634, %v625, 0
        %869 = vmatprep.subr.mxu0 0.0
        %870 = vmatpush1.xpose.msra.mxu0 %v867
        %871 = vmatprep.subr.mxu0 0.0
        %872 = vmatpush1.xpose.msra.mxu0 0.0
        %873 = vmatprep.subr.mxu0 0.0
        %874 = vmatpush1.xpose.msra.mxu0 0.0
        %875 = vmatprep.subr.mxu0 0.0
        %876 = vmatpush1.xpose.msra.mxu0 0.0
        %877 = vmatprep.subr.mxu0 0.0
        %878 = vmatpush1.xpose.msra.mxu0 0.0
        %879 = vmatprep.subr.mxu0 0.0
        %880 = vmatpush1.xpose.msra.mxu0 0.0
        %881 = vmatprep.subr.mxu0 0.0
        %882 = vmatpush1.xpose.msra.mxu0 0.0
        %883 = vmatprep.subr.mxu0 0.0
        %884 = vmatpush1.xpose.msra.mxu0 0.0
        %885 = vmatprep.subr.mxu0 0.0
        %886 = vmatpush1.xpose.msra.mxu0 0.0
        %887 = vmatprep.subr.mxu0 0.0
        %888 = vmatpush1.xpose.msra.mxu0 0.0
        %889 = vmatprep.subr.mxu0 0.0
        %890 = vmatpush1.xpose.msra.mxu0 0.0
        %891 = vmatprep.subr.mxu0 0.0
        %892 = vmatpush1.xpose.msra.mxu0 0.0
        %893 = vmatprep.subr.mxu0 0.0
        %894 = vmatpush1.xpose.msra.mxu0 0.0
        %895 = vmatprep.subr.mxu0 0.0
        %896 = vmatpush1.xpose.msra.mxu0 0.0
        %897 = vmatprep.subr.mxu0 0.0
        %898 = vmatpush1.xpose.msra.mxu0 0.0
        %899 = vmatprep.subr.mxu0 0.0
        %900 = vmatpush1.xpose.msra.mxu0 0.0
        %901 = vmatprep.subr.mxu0 0.0
        %902 = vmatpush1.xpose.msra.mxu0 0.0
        %903 = vmatprep.subr.mxu0 0.0
        %904 = vmatpush1.xpose.msra.mxu0 0.0
        %905 = vmatprep.subr.mxu0 0.0
        %906 = vmatpush1.xpose.msra.mxu0 0.0
        %907 = vmatprep.subr.mxu0 0.0
        %908 = vmatpush1.xpose.msra.mxu0 0.0
        %909 = vmatprep.subr.mxu0 0.0
        %910 = vmatpush1.xpose.msra.mxu0 0.0
        %911 = vmatprep.subr.mxu0 0.0
        %912 = vmatpush1.xpose.msra.mxu0 0.0
        %913 = vmatprep.subr.mxu0 0.0
        %914 = vmatpush1.xpose.msra.mxu0 0.0
        %915 = vmatprep.subr.mxu0 0.0
        %916 = vmatpush1.xpose.msra.mxu0 0.0
        %917 = vmatprep.subr.mxu0 0.0
        %918 = vmatpush1.xpose.msra.mxu0 0.0
        %919 = vmatprep.subr.mxu0 0.0
        %920 = vmatpush1.xpose.msra.mxu0 0.0
        %921 = vmatprep.subr.mxu0 0.0
        %922 = vmatpush1.xpose.msra.mxu0 0.0
        %923 = vmatprep.subr.mxu0 0.0
        %924 = vmatpush1.xpose.msra.mxu0 0.0
        %925 = vmatprep.subr.mxu0 0.0
        %926 = vmatpush1.xpose.msra.mxu0 0.0
        %927 = vmatprep.subr.mxu0 0.0
        %928 = vmatpush1.xpose.msra.mxu0 0.0
        %929 = vmatprep.subr.mxu0 0.0
        %930 = vmatpush1.xpose.msra.mxu0 0.0
        %931 = vmatprep.subr.mxu0 0.0
        %932 = vmatpush1.xpose.msra.mxu0 0.0
        %933 = vmatprep.mubr.f32.mxu0 0.0
        %934 = vmatmul.mubr.f32.gmra.mrb[0].mxu0 %v864
        %v935 = vpop.f32.mrb[0].mxu0
        %v936 = vadd.f32 0.0, %v935
        %v937 = vpop.f32.mrb[0].mxu0
        %938 = vdwg.mxu0
        %v939 = vld [vmem:[#allocation3] sm:$0xff]
        %v940 = vld [vmem:[#allocation3 + $0x8] sm:$0xff]
        %v941 = vld [vmem:[#allocation3 + $0x10] sm:$0xff]
        %v942 = vld [vmem:[#allocation3 + $0x18] sm:$0xff]
        %v943 = vsel %vm634, %v708, -inf
        %944 = vmax.xlane.f32.xlu0 %v943
        %v945 = vpop.xlane.xlu0 %944
        %v946 = vsel %vm634, %v784, -inf
        %947 = vmax.xlane.f32.xlu0 %v946
        %v948 = vpop.xlane.xlu0 %947
        %v949 = vsel %vm634, %v860, -inf
        %950 = vmax.xlane.f32.xlu0 %v949
        %v951 = vpop.xlane.xlu0 %950
        %v952 = vsel %vm634, %v936, -inf
        %953 = vmax.xlane.f32.xlu0 %v952
        %v954 = vpop.xlane.xlu0 %953
        %v955 = vmax.f32 %v939, %v945
        %v956 = vmax.f32 %v940, %v948
        %v957 = vmax.f32 %v941, %v951
        %v958 = vmax.f32 %v942, %v954
        %v959 = vsub.f32 %v939, %v955
        %v960 = vsub.f32 %v940, %v956
        %v961 = vsub.f32 %v941, %v957
        %v962 = vsub.f32 %v942, %v958
        %v963 = vmul.f32 %v959, 1.442695
        %v964 = vpow.pop %v963
        %v965 = vmul.f32 %v960, 1.442695
        %v966 = vpow.pop %v965
        %v967 = vmul.f32 %v961, 1.442695
        %v968 = vpow.pop %v967
        %v969 = vmul.f32 %v962, 1.442695
        %v970 = vpow.pop %v969
        %972 = vset.pattern.permute.xlu0 0
        %973 = vperm.xlu0 %972, %v955
        %v974 = vpop.permute.xlu0 %973
        %977 = vset.pattern.permute.xlu0 0
        %978 = vperm.xlu0 %977, %v956
        %v979 = vpop.permute.xlu0 %978
        %982 = vset.pattern.permute.xlu0 0
        %983 = vperm.xlu0 %982, %v957
        %v984 = vpop.permute.xlu0 %983
        %987 = vset.pattern.permute.xlu0 0
        %988 = vperm.xlu0 %987, %v958
        %v989 = vpop.permute.xlu0 %988
        %v991 = vsub.f32 %v708, %v974
        %v992 = vsub.f32 %v784, %v979
        %v993 = vsub.f32 %v860, %v984
        %v994 = vsub.f32 %v936, %v989
        %v995 = vmul.f32 %v991, 1.442695
        %v996 = vpow.pop %v995
        %v997 = vmul.f32 %v992, 1.442695
        %v998 = vpow.pop %v997
        %v999 = vmul.f32 %v993, 1.442695
        %v1000 = vpow.pop %v999
        %v1001 = vmul.f32 %v994, 1.442695
        %v1002 = vpow.pop %v1001
        %v1003 = vld [vmem:[#allocation4] sm:$0xff]
        %v1004 = vld [vmem:[#allocation4 + $0x8] sm:$0xff]
        %v1005 = vld [vmem:[#allocation4 + $0x10] sm:$0xff]
        %v1006 = vld [vmem:[#allocation4 + $0x18] sm:$0xff]
        %v1007 = vmul.f32 %v964, %v1003
        %v1008 = vmul.f32 %v966, %v1004
        %v1009 = vmul.f32 %v968, %v1005
        %v1010 = vmul.f32 %v970, %v1006
        %v1011 = vsel %vm634, %v996, 0.0
        %1012 = vadd.xlane.f32.xlu0 %v1011
        %v1013 = vpop.xlane.xlu0 %1012
        %v1014 = vsel %vm634, %v998, 0.0
        %1015 = vadd.xlane.f32.xlu0 %v1014
        %v1016 = vpop.xlane.xlu0 %1015
        %v1017 = vsel %vm634, %v1000, 0.0
        %1018 = vadd.xlane.f32.xlu0 %v1017
        %v1019 = vpop.xlane.xlu0 %1018
        %v1020 = vsel %vm634, %v1002, 0.0
        %1021 = vadd.xlane.f32.xlu0 %v1020
        %v1022 = vpop.xlane.xlu0 %1021
        %v1023 = vadd.f32 %v1007, %v1013
        %v1024 = vadd.f32 %v1008, %v1016
        %v1025 = vadd.f32 %v1009, %v1019
        %v1026 = vadd.f32 %v1010, %v1022
        %vm1027 = vcmask 7168
        %1028 = vst.msk [vmem:[#allocation4] sm:$0xff] %vm1027, %v1023
        %1029 = vst.msk [vmem:[#allocation4 + $0x8] sm:$0xff] %vm1027, %v1024
        %1030 = vst.msk [vmem:[#allocation4 + $0x10] sm:$0xff] %vm1027, %v1025
        %1031 = vst.msk [vmem:[#allocation4 + $0x18] sm:$0xff] %vm1027, %v1026
        %v1032 = vld [vmem:[#allocation5] sm:$0xff]
        %v1033 = vld [vmem:[#allocation5 + $0x8] sm:$0xff]
        %v1034 = vld [vmem:[#allocation5 + $0x10] sm:$0xff]
        %v1035 = vld [vmem:[#allocation5 + $0x18] sm:$0xff]
        %1037 = vset.pattern.permute.xlu0 0
        %1038 = vperm.xlu0 %1037, %v964
        %v1039 = vpop.permute.xlu0 %1038
        %1042 = vset.pattern.permute.xlu0 0
        %1043 = vperm.xlu0 %1042, %v966
        %v1044 = vpop.permute.xlu0 %1043
        %1047 = vset.pattern.permute.xlu0 0
        %1048 = vperm.xlu0 %1047, %v968
        %v1049 = vpop.permute.xlu0 %1048
        %1052 = vset.pattern.permute.xlu0 0
        %1053 = vperm.xlu0 %1052, %v970
        %v1054 = vpop.permute.xlu0 %1053
        %v1056 = vmul.f32 %v1039, %v1032
        %v1057 = vmul.f32 %v1044, %v1033
        %v1058 = vmul.f32 %v1049, %v1034
        %v1059 = vmul.f32 %v1054, %v1035
        %v1061 = vsel %vm634, %v996, 0
        %1063 = vmatprep.subr.mxu0 0.0
        %1064 = vmatpush1.msra.mxu0 %v626
        %1065 = vmatprep.subr.mxu0 0.0
        %1066 = vmatpush1.msra.mxu0 0.0
        %1067 = vmatprep.subr.mxu0 0.0
        %1068 = vmatpush1.msra.mxu0 0.0
        %1069 = vmatprep.subr.mxu0 0.0
        %1070 = vmatpush1.msra.mxu0 0.0
        %1071 = vmatprep.subr.mxu0 0.0
        %1072 = vmatpush1.msra.mxu0 0.0
        %1073 = vmatprep.subr.mxu0 0.0
        %1074 = vmatpush1.msra.mxu0 0.0
        %1075 = vmatprep.subr.mxu0 0.0
        %1076 = vmatpush1.msra.mxu0 0.0
        %1077 = vmatprep.subr.mxu0 0.0
        %1078 = vmatpush1.msra.mxu0 0.0
        %1079 = vmatprep.subr.mxu0 0.0
        %1080 = vmatpush1.msra.mxu0 0.0
        %1081 = vmatprep.subr.mxu0 0.0
        %1082 = vmatpush1.msra.mxu0 0.0
        %1083 = vmatprep.subr.mxu0 0.0
        %1084 = vmatpush1.msra.mxu0 0.0
        %1085 = vmatprep.subr.mxu0 0.0
        %1086 = vmatpush1.msra.mxu0 0.0
        %1087 = vmatprep.subr.mxu0 0.0
        %1088 = vmatpush1.msra.mxu0 0.0
        %1089 = vmatprep.subr.mxu0 0.0
        %1090 = vmatpush1.msra.mxu0 0.0
        %1091 = vmatprep.subr.mxu0 0.0
        %1092 = vmatpush1.msra.mxu0 0.0
        %1093 = vmatprep.subr.mxu0 0.0
        %1094 = vmatpush1.msra.mxu0 0.0
        %1095 = vmatprep.subr.mxu0 0.0
        %1096 = vmatpush1.msra.mxu0 0.0
        %1097 = vmatprep.subr.mxu0 0.0
        %1098 = vmatpush1.msra.mxu0 0.0
        %1099 = vmatprep.subr.mxu0 0.0
        %1100 = vmatpush1.msra.mxu0 0.0
        %1101 = vmatprep.subr.mxu0 0.0
        %1102 = vmatpush1.msra.mxu0 0.0
        %1103 = vmatprep.subr.mxu0 0.0
        %1104 = vmatpush1.msra.mxu0 0.0
        %1105 = vmatprep.subr.mxu0 0.0
        %1106 = vmatpush1.msra.mxu0 0.0
        %1107 = vmatprep.subr.mxu0 0.0
        %1108 = vmatpush1.msra.mxu0 0.0
        %1109 = vmatprep.subr.mxu0 0.0
        %1110 = vmatpush1.msra.mxu0 0.0
        %1111 = vmatprep.subr.mxu0 0.0
        %1112 = vmatpush1.msra.mxu0 0.0
        %1113 = vmatprep.subr.mxu0 0.0
        %1114 = vmatpush1.msra.mxu0 0.0
        %1115 = vmatprep.subr.mxu0 0.0
        %1116 = vmatpush1.msra.mxu0 0.0
        %1117 = vmatprep.subr.mxu0 0.0
        %1118 = vmatpush1.msra.mxu0 0.0
        %1119 = vmatprep.subr.mxu0 0.0
        %1120 = vmatpush1.msra.mxu0 0.0
        %1121 = vmatprep.subr.mxu0 0.0
        %1122 = vmatpush1.msra.mxu0 0.0
        %1123 = vmatprep.subr.mxu0 0.0
        %1124 = vmatpush1.msra.mxu0 0.0
        %1125 = vmatprep.subr.mxu0 0.0
        %1126 = vmatpush1.msra.mxu0 0.0
        %1127 = vmatprep.mubr.f32.mxu0 0.0
        %1128 = vmatmul.mubr.f32.gmra.mrb[0].mxu0 %v1061
        %v1129 = vpop.f32.mrb[0].mxu0
        %v1130 = vadd.f32 0.0, %v1129
        %v1131 = vpop.f32.mrb[0].mxu0
        %1132 = vdwg.mxu0
        %v1134 = vsel %vm634, %v998, 0
        %1136 = vmatprep.subr.mxu0 0.0
        %1137 = vmatpush1.msra.mxu0 %v627
        %1138 = vmatprep.subr.mxu0 0.0
        %1139 = vmatpush1.msra.mxu0 0.0
        %1140 = vmatprep.subr.mxu0 0.0
        %1141 = vmatpush1.msra.mxu0 0.0
        %1142 = vmatprep.subr.mxu0 0.0
        %1143 = vmatpush1.msra.mxu0 0.0
        %1144 = vmatprep.subr.mxu0 0.0
        %1145 = vmatpush1.msra.mxu0 0.0
        %1146 = vmatprep.subr.mxu0 0.0
        %1147 = vmatpush1.msra.mxu0 0.0
        %1148 = vmatprep.subr.mxu0 0.0
        %1149 = vmatpush1.msra.mxu0 0.0
        %1150 = vmatprep.subr.mxu0 0.0
        %1151 = vmatpush1.msra.mxu0 0.0
        %1152 = vmatprep.subr.mxu0 0.0
        %1153 = vmatpush1.msra.mxu0 0.0
        %1154 = vmatprep.subr.mxu0 0.0
        %1155 = vmatpush1.msra.mxu0 0.0
        %1156 = vmatprep.subr.mxu0 0.0
        %1157 = vmatpush1.msra.mxu0 0.0
        %1158 = vmatprep.subr.mxu0 0.0
        %1159 = vmatpush1.msra.mxu0 0.0
        %1160 = vmatprep.subr.mxu0 0.0
        %1161 = vmatpush1.msra.mxu0 0.0
        %1162 = vmatprep.subr.mxu0 0.0
        %1163 = vmatpush1.msra.mxu0 0.0
        %1164 = vmatprep.subr.mxu0 0.0
        %1165 = vmatpush1.msra.mxu0 0.0
        %1166 = vmatprep.subr.mxu0 0.0
        %1167 = vmatpush1.msra.mxu0 0.0
        %1168 = vmatprep.subr.mxu0 0.0
        %1169 = vmatpush1.msra.mxu0 0.0
        %1170 = vmatprep.subr.mxu0 0.0
        %1171 = vmatpush1.msra.mxu0 0.0
        %1172 = vmatprep.subr.mxu0 0.0
        %1173 = vmatpush1.msra.mxu0 0.0
        %1174 = vmatprep.subr.mxu0 0.0
        %1175 = vmatpush1.msra.mxu0 0.0
        %1176 = vmatprep.subr.mxu0 0.0
        %1177 = vmatpush1.msra.mxu0 0.0
        %1178 = vmatprep.subr.mxu0 0.0
        %1179 = vmatpush1.msra.mxu0 0.0
        %1180 = vmatprep.subr.mxu0 0.0
        %1181 = vmatpush1.msra.mxu0 0.0
        %1182 = vmatprep.subr.mxu0 0.0
        %1183 = vmatpush1.msra.mxu0 0.0
        %1184 = vmatprep.subr.mxu0 0.0
        %1185 = vmatpush1.msra.mxu0 0.0
        %1186 = vmatprep.subr.mxu0 0.0
        %1187 = vmatpush1.msra.mxu0 0.0
        %1188 = vmatprep.subr.mxu0 0.0
        %1189 = vmatpush1.msra.mxu0 0.0
        %1190 = vmatprep.subr.mxu0 0.0
        %1191 = vmatpush1.msra.mxu0 0.0
        %1192 = vmatprep.subr.mxu0 0.0
        %1193 = vmatpush1.msra.mxu0 0.0
        %1194 = vmatprep.subr.mxu0 0.0
        %1195 = vmatpush1.msra.mxu0 0.0
        %1196 = vmatprep.subr.mxu0 0.0
        %1197 = vmatpush1.msra.mxu0 0.0
        %1198 = vmatprep.subr.mxu0 0.0
        %1199 = vmatpush1.msra.mxu0 0.0
        %1200 = vmatprep.mubr.f32.mxu0 0.0
        %1201 = vmatmul.mubr.f32.gmra.mrb[0].mxu0 %v1134
        %v1202 = vpop.f32.mrb[0].mxu0
        %v1203 = vadd.f32 0.0, %v1202
        %v1204 = vpop.f32.mrb[0].mxu0
        %1205 = vdwg.mxu0
        %v1207 = vsel %vm634, %v1000, 0
        %1209 = vmatprep.subr.mxu0 0.0
        %1210 = vmatpush1.msra.mxu0 %v628
        %1211 = vmatprep.subr.mxu0 0.0
        %1212 = vmatpush1.msra.mxu0 0.0
        %1213 = vmatprep.subr.mxu0 0.0
        %1214 = vmatpush1.msra.mxu0 0.0
        %1215 = vmatprep.subr.mxu0 0.0
        %1216 = vmatpush1.msra.mxu0 0.0
        %1217 = vmatprep.subr.mxu0 0.0
        %1218 = vmatpush1.msra.mxu0 0.0
        %1219 = vmatprep.subr.mxu0 0.0
        %1220 = vmatpush1.msra.mxu0 0.0
        %1221 = vmatprep.subr.mxu0 0.0
        %1222 = vmatpush1.msra.mxu0 0.0
        %1223 = vmatprep.subr.mxu0 0.0
        %1224 = vmatpush1.msra.mxu0 0.0
        %1225 = vmatprep.subr.mxu0 0.0
        %1226 = vmatpush1.msra.mxu0 0.0
        %1227 = vmatprep.subr.mxu0 0.0
        %1228 = vmatpush1.msra.mxu0 0.0
        %1229 = vmatprep.subr.mxu0 0.0
        %1230 = vmatpush1.msra.mxu0 0.0
        %1231 = vmatprep.subr.mxu0 0.0
        %1232 = vmatpush1.msra.mxu0 0.0
        %1233 = vmatprep.subr.mxu0 0.0
        %1234 = vmatpush1.msra.mxu0 0.0
        %1235 = vmatprep.subr.mxu0 0.0
        %1236 = vmatpush1.msra.mxu0 0.0
        %1237 = vmatprep.subr.mxu0 0.0
        %1238 = vmatpush1.msra.mxu0 0.0
        %1239 = vmatprep.subr.mxu0 0.0
        %1240 = vmatpush1.msra.mxu0 0.0
        %1241 = vmatprep.subr.mxu0 0.0
        %1242 = vmatpush1.msra.mxu0 0.0
        %1243 = vmatprep.subr.mxu0 0.0
        %1244 = vmatpush1.msra.mxu0 0.0
        %1245 = vmatprep.subr.mxu0 0.0
        %1246 = vmatpush1.msra.mxu0 0.0
        %1247 = vmatprep.subr.mxu0 0.0
        %1248 = vmatpush1.msra.mxu0 0.0
        %1249 = vmatprep.subr.mxu0 0.0
        %1250 = vmatpush1.msra.mxu0 0.0
        %1251 = vmatprep.subr.mxu0 0.0
        %1252 = vmatpush1.msra.mxu0 0.0
        %1253 = vmatprep.subr.mxu0 0.0
        %1254 = vmatpush1.msra.mxu0 0.0
        %1255 = vmatprep.subr.mxu0 0.0
        %1256 = vmatpush1.msra.mxu0 0.0
        %1257 = vmatprep.subr.mxu0 0.0
        %1258 = vmatpush1.msra.mxu0 0.0
        %1259 = vmatprep.subr.mxu0 0.0
        %1260 = vmatpush1.msra.mxu0 0.0
        %1261 = vmatprep.subr.mxu0 0.0
        %1262 = vmatpush1.msra.mxu0 0.0
        %1263 = vmatprep.subr.mxu0 0.0
        %1264 = vmatpush1.msra.mxu0 0.0
        %1265 = vmatprep.subr.mxu0 0.0
        %1266 = vmatpush1.msra.mxu0 0.0
        %1267 = vmatprep.subr.mxu0 0.0
        %1268 = vmatpush1.msra.mxu0 0.0
        %1269 = vmatprep.subr.mxu0 0.0
        %1270 = vmatpush1.msra.mxu0 0.0
        %1271 = vmatprep.subr.mxu0 0.0
        %1272 = vmatpush1.msra.mxu0 0.0
        %1273 = vmatprep.mubr.f32.mxu0 0.0
        %1274 = vmatmul.mubr.f32.gmra.mrb[0].mxu0 %v1207
        %v1275 = vpop.f32.mrb[0].mxu0
        %v1276 = vadd.f32 0.0, %v1275
        %v1277 = vpop.f32.mrb[0].mxu0
        %1278 = vdwg.mxu0
        %v1280 = vsel %vm634, %v1002, 0
        %1282 = vmatprep.subr.mxu0 0.0
        %1283 = vmatpush1.msra.mxu0 %v629
        %1284 = vmatprep.subr.mxu0 0.0
        %1285 = vmatpush1.msra.mxu0 0.0
        %1286 = vmatprep.subr.mxu0 0.0
        %1287 = vmatpush1.msra.mxu0 0.0
        %1288 = vmatprep.subr.mxu0 0.0
        %1289 = vmatpush1.msra.mxu0 0.0
        %1290 = vmatprep.subr.mxu0 0.0
        %1291 = vmatpush1.msra.mxu0 0.0
        %1292 = vmatprep.subr.mxu0 0.0
        %1293 = vmatpush1.msra.mxu0 0.0
        %1294 = vmatprep.subr.mxu0 0.0
        %1295 = vmatpush1.msra.mxu0 0.0
        %1296 = vmatprep.subr.mxu0 0.0
        %1297 = vmatpush1.msra.mxu0 0.0
        %1298 = vmatprep.subr.mxu0 0.0
        %1299 = vmatpush1.msra.mxu0 0.0
        %1300 = vmatprep.subr.mxu0 0.0
        %1301 = vmatpush1.msra.mxu0 0.0
        %1302 = vmatprep.subr.mxu0 0.0
        %1303 = vmatpush1.msra.mxu0 0.0
        %1304 = vmatprep.subr.mxu0 0.0
        %1305 = vmatpush1.msra.mxu0 0.0
        %1306 = vmatprep.subr.mxu0 0.0
        %1307 = vmatpush1.msra.mxu0 0.0
        %1308 = vmatprep.subr.mxu0 0.0
        %1309 = vmatpush1.msra.mxu0 0.0
        %1310 = vmatprep.subr.mxu0 0.0
        %1311 = vmatpush1.msra.mxu0 0.0
        %1312 = vmatprep.subr.mxu0 0.0
        %1313 = vmatpush1.msra.mxu0 0.0
        %1314 = vmatprep.subr.mxu0 0.0
        %1315 = vmatpush1.msra.mxu0 0.0
        %1316 = vmatprep.subr.mxu0 0.0
        %1317 = vmatpush1.msra.mxu0 0.0
        %1318 = vmatprep.subr.mxu0 0.0
        %1319 = vmatpush1.msra.mxu0 0.0
        %1320 = vmatprep.subr.mxu0 0.0
        %1321 = vmatpush1.msra.mxu0 0.0
        %1322 = vmatprep.subr.mxu0 0.0
        %1323 = vmatpush1.msra.mxu0 0.0
        %1324 = vmatprep.subr.mxu0 0.0
        %1325 = vmatpush1.msra.mxu0 0.0
        %1326 = vmatprep.subr.mxu0 0.0
        %1327 = vmatpush1.msra.mxu0 0.0
        %1328 = vmatprep.subr.mxu0 0.0
        %1329 = vmatpush1.msra.mxu0 0.0
        %1330 = vmatprep.subr.mxu0 0.0
        %1331 = vmatpush1.msra.mxu0 0.0
        %1332 = vmatprep.subr.mxu0 0.0
        %1333 = vmatpush1.msra.mxu0 0.0
        %1334 = vmatprep.subr.mxu0 0.0
        %1335 = vmatpush1.msra.mxu0 0.0
        %1336 = vmatprep.subr.mxu0 0.0
        %1337 = vmatpush1.msra.mxu0 0.0
        %1338 = vmatprep.subr.mxu0 0.0
        %1339 = vmatpush1.msra.mxu0 0.0
        %1340 = vmatprep.subr.mxu0 0.0
        %1341 = vmatpush1.msra.mxu0 0.0
        %1342 = vmatprep.subr.mxu0 0.0
        %1343 = vmatpush1.msra.mxu0 0.0
        %1344 = vmatprep.subr.mxu0 0.0
        %1345 = vmatpush1.msra.mxu0 0.0
        %1346 = vmatprep.mubr.f32.mxu0 0.0
        %1347 = vmatmul.mubr.f32.gmra.mrb[0].mxu0 %v1280
        %v1348 = vpop.f32.mrb[0].mxu0
        %v1349 = vadd.f32 0.0, %v1348
        %v1350 = vpop.f32.mrb[0].mxu0
        %1351 = vdwg.mxu0
        %v1352 = vadd.f32 %v1056, %v1130
        %v1353 = vadd.f32 %v1057, %v1203
        %v1354 = vadd.f32 %v1058, %v1276
        %v1355 = vadd.f32 %v1059, %v1349
        %1356 = vst.msk [vmem:[#allocation5] sm:$0xff] %vm634, %v1352
        %1357 = vst.msk [vmem:[#allocation5 + $0x8] sm:$0xff] %vm634, %v1353
        %1358 = vst.msk [vmem:[#allocation5 + $0x10] sm:$0xff] %vm634, %v1354
        %1359 = vst.msk [vmem:[#allocation5 + $0x18] sm:$0xff] %vm634, %v1355
        %1360 = vst.msk [vmem:[#allocation3] sm:$0xff] %vm1027, %v955
        %1361 = vst.msk [vmem:[#allocation3 + $0x8] sm:$0xff] %vm1027, %v956
        %1362 = vst.msk [vmem:[#allocation3 + $0x10] sm:$0xff] %vm1027, %v957
        %1363 = vst.msk [vmem:[#allocation3 + $0x18] sm:$0xff] %vm1027, %v958
        // Predicated region
        $region53: #{multi_head_cross_attention.1} parent=47 // pred_check
          %p1364 = pneg %p368
        $region54: #{multi_head_cross_attention.1} parent=47 // pred_check_branch
          %1366 = sbr.rel (%p1364) target = $region56
        $region55: #{multi_head_cross_attention.1} parent=47 // pred_region
          %v1367 = vld [vmem:[#allocation5] sm:$0xff]
          %v1368 = vld [vmem:[#allocation5 + $0x8] sm:$0xff]
          %v1369 = vld [vmem:[#allocation5 + $0x10] sm:$0xff]
          %v1370 = vld [vmem:[#allocation5 + $0x18] sm:$0xff]
          %v1371 = vld [vmem:[#allocation4] sm:$0xff]
          %v1372 = vld [vmem:[#allocation4 + $0x8] sm:$0xff]
          %v1373 = vld [vmem:[#allocation4 + $0x10] sm:$0xff]
          %v1374 = vld [vmem:[#allocation4 + $0x18] sm:$0xff]
          %v1375 = vrcp.pop %v1371
          %v1376 = vrcp.pop %v1372
          %v1377 = vrcp.pop %v1373
          %v1378 = vrcp.pop %v1374
          %1380 = vset.pattern.permute.xlu0 0
          %1381 = vperm.xlu0 %1380, %v1375
          %v1382 = vpop.permute.xlu0 %1381
          %1385 = vset.pattern.permute.xlu0 0
          %1386 = vperm.xlu0 %1385, %v1376
          %v1387 = vpop.permute.xlu0 %1386
          %1390 = vset.pattern.permute.xlu0 0
          %1391 = vperm.xlu0 %1390, %v1377
          %v1392 = vpop.permute.xlu0 %1391
          %1395 = vset.pattern.permute.xlu0 0
          %1396 = vperm.xlu0 %1395, %v1378
          %v1397 = vpop.permute.xlu0 %1396
          %v1399 = vmul.f32 %v1367, %v1382
          %v1400 = vmul.f32 %v1368, %v1387
          %v1401 = vmul.f32 %v1369, %v1392
          %v1402 = vmul.f32 %v1370, %v1397
          %v1403 = vcombine.low %v1399, %v1401
          %v1404 = vcombine.high %v1399, %v1401
          %v1406 = vunpack.c.l.s4 1983009808
          %v1407 = vunpack.c.0.s8 %v1406
          %v1408 = vlaneseq
          %v1409 = vshrl.u32 %v1408, 7
          %v1410 = vsub.s32 %v1407, %v1409
          %v1411 = vrot.slane %v1403, %v1410
          %v1413 = vunpack.c.l.s4 1983009808
          %v1414 = vunpack.c.0.s8 %v1413
          %v1415 = vlaneseq
          %v1416 = vshrl.u32 %v1415, 7
          %v1417 = vsub.s32 %v1414, %v1416
          %v1418 = vrot.slane %v1404, %v1417
          %v1419 = vcombine.low %v1400, %v1402
          %v1420 = vcombine.high %v1400, %v1402
          %v1422 = vunpack.c.l.s4 1983009808
          %v1423 = vunpack.c.0.s8 %v1422
          %v1424 = vlaneseq
          %v1425 = vshrl.u32 %v1424, 7
          %v1426 = vsub.s32 %v1423, %v1425
          %v1427 = vrot.slane %v1419, %v1426
          %v1429 = vunpack.c.l.s4 1983009808
          %v1430 = vunpack.c.0.s8 %v1429
          %v1431 = vlaneseq
          %v1432 = vshrl.u32 %v1431, 7
          %v1433 = vsub.s32 %v1430, %v1432
          %v1434 = vrot.slane %v1420, %v1433
          %v1435 = vcombine.low %v1411, %v1427
          %v1436 = vcombine.high %v1411, %v1427
          %v1438 = vunpack.c.l.s4 1934713408
          %v1439 = vunpack.c.0.s8 %v1438
          %v1440 = vlaneseq
          %v1441 = vshrl.u32 %v1440, 7
          %v1442 = vsub.s32 %v1439, %v1441
          %v1443 = vrot.slane %v1435, %v1442
          %v1445 = vunpack.c.l.s4 1934713408
          %v1446 = vunpack.c.0.s8 %v1445
          %v1447 = vlaneseq
          %v1448 = vshrl.u32 %v1447, 7
          %v1449 = vsub.s32 %v1446, %v1448
          %v1450 = vrot.slane %v1436, %v1449
          %v1451 = vcombine.low %v1418, %v1434
          %v1452 = vcombine.high %v1418, %v1434
          %v1454 = vunpack.c.l.s4 1934713408
          %v1455 = vunpack.c.0.s8 %v1454
          %v1456 = vlaneseq
          %v1457 = vshrl.u32 %v1456, 7
          %v1458 = vsub.s32 %v1455, %v1457
          %v1459 = vrot.slane %v1451, %v1458
          %v1461 = vunpack.c.l.s4 1934713408
          %v1462 = vunpack.c.0.s8 %v1461
          %v1463 = vlaneseq
          %v1464 = vshrl.u32 %v1463, 7
          %v1465 = vsub.s32 %v1462, %v1464
          %v1466 = vrot.slane %v1452, %v1465
          %v1467 = vcombine.high %v1443, 0.0
          %v1468 = vcombine.high %v1450, 0.0
          %v1469 = vcombine.high %v1459, 0.0
          %v1470 = vcombine.high %v1466, 0.0
          %v1471 = vcombine.low %v1443, %v1450
          %v1473 = vunpack.c.l.s4 1983009808
          %v1474 = vunpack.c.0.s8 %v1473
          %v1475 = vlaneseq
          %v1476 = vshrl.u32 %v1475, 7
          %v1477 = vsub.s32 %v1474, %v1476
          %v1478 = vrot.slane %v1471, %v1477
          %v1479 = vcombine.low %v1467, %v1468
          %v1481 = vunpack.c.l.s4 1983009808
          %v1482 = vunpack.c.0.s8 %v1481
          %v1483 = vlaneseq
          %v1484 = vshrl.u32 %v1483, 7
          %v1485 = vsub.s32 %v1482, %v1484
          %v1486 = vrot.slane %v1479, %v1485
          %v1487 = vcombine.low %v1459, %v1466
          %v1489 = vunpack.c.l.s4 1983009808
          %v1490 = vunpack.c.0.s8 %v1489
          %v1491 = vlaneseq
          %v1492 = vshrl.u32 %v1491, 7
          %v1493 = vsub.s32 %v1490, %v1492
          %v1494 = vrot.slane %v1487, %v1493
          %v1495 = vcombine.low %v1469, %v1470
          %v1497 = vunpack.c.l.s4 1983009808
          %v1498 = vunpack.c.0.s8 %v1497
          %v1499 = vlaneseq
          %v1500 = vshrl.u32 %v1499, 7
          %v1501 = vsub.s32 %v1498, %v1500
          %v1502 = vrot.slane %v1495, %v1501
          %v1503 = vcombine.low %v1478, %v1486
          %v1504 = vcombine.high %v1478, %v1486
          %v1506 = vunpack.c.l.s4 1934713408
          %v1507 = vunpack.c.0.s8 %v1506
          %v1508 = vlaneseq
          %v1509 = vshrl.u32 %v1508, 7
          %v1510 = vsub.s32 %v1507, %v1509
          %v1511 = vrot.slane %v1503, %v1510
          %v1513 = vunpack.c.l.s4 1934713408
          %v1514 = vunpack.c.0.s8 %v1513
          %v1515 = vlaneseq
          %v1516 = vshrl.u32 %v1515, 7
          %v1517 = vsub.s32 %v1514, %v1516
          %v1518 = vrot.slane %v1504, %v1517
          %v1519 = vcombine.low %v1494, %v1502
          %v1520 = vcombine.high %v1494, %v1502
          %v1522 = vunpack.c.l.s4 1934713408
          %v1523 = vunpack.c.0.s8 %v1522
          %v1524 = vlaneseq
          %v1525 = vshrl.u32 %v1524, 7
          %v1526 = vsub.s32 %v1523, %v1525
          %v1527 = vrot.slane %v1519, %v1526
          %v1529 = vunpack.c.l.s4 1934713408
          %v1530 = vunpack.c.0.s8 %v1529
          %v1531 = vlaneseq
          %v1532 = vshrl.u32 %v1531, 7
          %v1533 = vsub.s32 %v1530, %v1532
          %v1534 = vrot.slane %v1520, %v1533
          %v1535 = vcombine.low %v1511, %v1527
          %v1536 = vcombine.high %v1511, %v1527
          %v1537 = vcombine.low %v1518, %v1534
          %v1538 = vcombine.high %v1518, %v1534
          %1540 = vrot.lane.b32.xlu0 %v1536, 8
          %v1541 = vpop.permute.xlu0 %1540
          %1544 = vrot.lane.b32.xlu0 %v1537, 16
          %v1545 = vpop.permute.xlu0 %1544
          %1548 = vrot.lane.b32.xlu0 %v1538, 24
          %v1549 = vpop.permute.xlu0 %1548
          %v1551 = vsel %vm634, %v1535, %v1541
          %vm1552 = vcmask 130048
          %v1553 = vsel %vm1552, %v1551, %v1545
          %vm1554 = vcmask 195584
          %v1555 = vsel %vm1554, %v1553, %v1549
          %v1556 = vld [vmem:[%s5] sm:$0xff]
          %v1557 = vld [vmem:[%s5 + $0x8] sm:$0xff]
          %v1558 = vld [vmem:[%s5 + $0x10] sm:$0xff]
          %v1559 = vld [vmem:[%s5 + $0x18] sm:$0xff]
          %v1560 = vld [vmem:[%s6] sm:$0x1]
          %v1562 = vlaneseq
          %v1563 = vshrl.u32 %v1562, 7
          %v1564 = vsub.s32 0, %v1563
          %v1565 = vrot.slane %v1560, %v1564
          %vm1567 = vcmask 261120
          %v1569 = vsel %vm1567, %v1555, 0
          %1571 = vmatprep.subr.mxu0 0.0
          %1572 = vmatpush1.msra.mxu0 %v1556
          %1573 = vmatprep.subr.mxu0 0.0
          %1574 = vmatpush1.msra.mxu0 %v1557
          %1575 = vmatprep.subr.mxu0 0.0
          %1576 = vmatpush1.msra.mxu0 %v1558
          %1577 = vmatprep.subr.mxu0 0.0
          %1578 = vmatpush1.msra.mxu0 %v1559
          %1579 = vmatprep.subr.mxu0 0.0
          %1580 = vmatpush1.msra.mxu0 0.0
          %1581 = vmatprep.subr.mxu0 0.0
          %1582 = vmatpush1.msra.mxu0 0.0
          %1583 = vmatprep.subr.mxu0 0.0
          %1584 = vmatpush1.msra.mxu0 0.0
          %1585 = vmatprep.subr.mxu0 0.0
          %1586 = vmatpush1.msra.mxu0 0.0
          %1587 = vmatprep.subr.mxu0 0.0
          %1588 = vmatpush1.msra.mxu0 0.0
          %1589 = vmatprep.subr.mxu0 0.0
          %1590 = vmatpush1.msra.mxu0 0.0
          %1591 = vmatprep.subr.mxu0 0.0
          %1592 = vmatpush1.msra.mxu0 0.0
          %1593 = vmatprep.subr.mxu0 0.0
          %1594 = vmatpush1.msra.mxu0 0.0
          %1595 = vmatprep.subr.mxu0 0.0
          %1596 = vmatpush1.msra.mxu0 0.0
          %1597 = vmatprep.subr.mxu0 0.0
          %1598 = vmatpush1.msra.mxu0 0.0
          %1599 = vmatprep.subr.mxu0 0.0
          %1600 = vmatpush1.msra.mxu0 0.0
          %1601 = vmatprep.subr.mxu0 0.0
          %1602 = vmatpush1.msra.mxu0 0.0
          %1603 = vmatprep.subr.mxu0 0.0
          %1604 = vmatpush1.msra.mxu0 0.0
          %1605 = vmatprep.subr.mxu0 0.0
          %1606 = vmatpush1.msra.mxu0 0.0
          %1607 = vmatprep.subr.mxu0 0.0
          %1608 = vmatpush1.msra.mxu0 0.0
          %1609 = vmatprep.subr.mxu0 0.0
          %1610 = vmatpush1.msra.mxu0 0.0
          %1611 = vmatprep.subr.mxu0 0.0
          %1612 = vmatpush1.msra.mxu0 0.0
          %1613 = vmatprep.subr.mxu0 0.0
          %1614 = vmatpush1.msra.mxu0 0.0
          %1615 = vmatprep.subr.mxu0 0.0
          %1616 = vmatpush1.msra.mxu0 0.0
          %1617 = vmatprep.subr.mxu0 0.0
          %1618 = vmatpush1.msra.mxu0 0.0
          %1619 = vmatprep.subr.mxu0 0.0
          %1620 = vmatpush1.msra.mxu0 0.0
          %1621 = vmatprep.subr.mxu0 0.0
          %1622 = vmatpush1.msra.mxu0 0.0
          %1623 = vmatprep.subr.mxu0 0.0
          %1624 = vmatpush1.msra.mxu0 0.0
          %1625 = vmatprep.subr.mxu0 0.0
          %1626 = vmatpush1.msra.mxu0 0.0
          %1627 = vmatprep.subr.mxu0 0.0
          %1628 = vmatpush1.msra.mxu0 0.0
          %1629 = vmatprep.subr.mxu0 0.0
          %1630 = vmatpush1.msra.mxu0 0.0
          %1631 = vmatprep.subr.mxu0 0.0
          %1632 = vmatpush1.msra.mxu0 0.0
          %1633 = vmatprep.subr.mxu0 0.0
          %1634 = vmatpush1.msra.mxu0 0.0
          %1635 = vmatprep.mubr.f32.mxu0 0.0
          %1636 = vmatmul.mubr.f32.gmra.mrb[0].mxu0 %v1569
          %v1637 = vpop.f32.mrb[0].mxu0
          %v1638 = vadd.f32 %v1565, %v1637
          %v1639 = vpop.f32.mrb[0].mxu0
          %1640 = vdwg.mxu0
          %1641 = vst.msk [vmem:[%s344] sm:$0xff] %vm1567, %v1638
        $region56: #{multi_head_cross_attention.1} parent=47 // pred_fallthru
          _
        %s1642 = sand.u32 %s218, 1
        %s1643 = scalar_lea.sflag [#allocation7], %s1642
        %s1644 = sand.u32 %s218, 1
        %s1645 = smul.addr %s1644, 8
        %s1646 = scalar_lea.vmem [#allocation6], %s1645
        // Predicated region
        $region57: #{multi_head_cross_attention.1} parent=47 // pred_check
          %p1647 = pneg %p228
        $region58: #{multi_head_cross_attention.1} parent=47 // pred_check_branch
          %1649 = sbr.rel (%p1647) target = $region60
        $region59: #{multi_head_cross_attention.1} parent=47 // pred_region
          %s1651 = ssub.s32 128, 128
          %1652 = vsyncadd %s1643, %s1651
          %s1653 = sadd.s32 %s27, %s26
          %s1654 = smul.addr %s1653, 128
          %s1655 = scalar_lea.hbm %s7, %s1654
          %s1657 = sshll.u32 %s1646, 4
          %s1658 = int_to_ptr.vmem [resolvable:$true] %s1657
          %1660 = dma.vmem_to_hbm [thread:$0]  %s1658, 128, %s1655, %s1643
        $region60: #{multi_head_cross_attention.1} parent=47 // pred_fallthru
          _
      $region48: #{multi_head_cross_attention.1} parent=5 // pred_fallthru
        _
      %p1661 = scmp.le.s32.totalorder 2, %s16
      // Predicated region
      $region61: #{multi_head_cross_attention.1} parent=5 // pred_check
        %p1662 = pneg %p1661
      $region62: #{multi_head_cross_attention.1} parent=5 // pred_check_branch
        %1664 = sbr.rel (%p1662) target = $region64
      $region63: #{multi_head_cross_attention.1} parent=5 // pred_region
        %s1665 = ssub.s32 %s16, 2
        // Predicated region
        $region65: #{multi_head_cross_attention.1} parent=63 // pred_check
          %p1666 = pneg %p234
        $region66: #{multi_head_cross_attention.1} parent=63 // pred_check_branch
          %1668 = sbr.rel (%p1666) target = $region68
        $region67: #{multi_head_cross_attention.1} parent=63 // pred_region
          %s1669 = sand.u32 %s219, 1
          %s1670 = scalar_lea.sflag [#allocation7], %s1669
          %s1671 = sand.u32 %s219, 1
          %s1672 = smul.addr %s1671, 8
          %s1673 = scalar_lea.vmem [#allocation6], %s1672
          %1674 = dma.done %s1670, 128
        $region68: #{multi_head_cross_attention.1} parent=63 // pred_fallthru
          _
      $region64: #{multi_head_cross_attention.1} parent=5 // pred_fallthru
        _
    $region6: #{multi_head_cross_attention.1} parent=1 // loop_footer
      %s20 = sadd.s32 1, %s16
    $region7: #{multi_head_cross_attention.1} parent=1 // loop_footer_branch
      %15 = sbr.rel target = $region3
    $region8: #{multi_head_cross_attention.1} parent=1 // loop_exit
      _
    %1675 = vsyncpa [#allocation7], 1
    %s1676 = scalar_lea.sflag [#allocation7], 1
    %1677 = vsyncpa %s1676, 1

</llo_original>
